<compile_context>
chip_gen: v7x
topology: tpu7x:2x2x1
jax: 0.10.0
libtpu: 0.0.40
codegen_flags: <defaults>
</compile_context>

<pallas_src>
import functools

import jax
import jax.numpy as jnp
from jax.experimental import pallas as pl
from jax.experimental.pallas import tpu as pltpu

LANE = 128
VMEM_LIMIT = 64 * 1024 * 1024   # <= physical VMEM on v5e/v6e (128MiB) and v7x (64MiB)


def _rup(x, m=LANE):
    return ((x + m - 1) // m) * m


def _leaky(x):
    return jnp.where(x >= 0, x, 0.2 * x)


# ----------------------------------------------------------------------------
# Generic fused 3x3 "same" conv kernel (stride 1, pad 1).
#   - halo handled in-kernel via a zero-initialised VMEM scratch buffer
#   - im2col + single MXU matmul (K = 9*Cin_pad), f32 accumulation
#   - optional fused input transform (LeakyReLU or (x+1)/2), output transform
#     (LeakyReLU or clamp(0,1)*2-1) and residual add
# ----------------------------------------------------------------------------
def _conv3x3_kernel(x_ref, w_ref, b_ref, *rest, H, W, C, pre, post, has_res):
    if has_res:
        res_ref, o_ref, buf_ref = rest
    else:
        o_ref, buf_ref = rest
    cin_p = buf_ref.shape[2]

    # zero scratch => zero halo (== Conv2d zero padding) and zero pad channels
    buf_ref[...] = jnp.zeros(buf_ref.shape, buf_ref.dtype)

    xv = x_ref[0]
    if pre == "lrelu":
        xv = _leaky(xv)            # lrelu(0) == 0, so the zero halo stays exact
    elif pre == "in_norm":
        xv = (xv + 1.0) * 0.5      # (x+1)/2 applied before padding, like torch
    buf_ref[1:H + 1, 1:W + 1, 0:C] = xv

    cols = [buf_ref[ky:ky + H, kx:kx + W, :]
            for ky in range(3) for kx in range(3)]
    patch = jnp.concatenate(cols, axis=-1).reshape(H * W, 9 * cin_p)
    acc = jnp.dot(patch, w_ref[...], preferred_element_type=jnp.float32)
    acc = acc + b_ref[0]

    if post == "lrelu":
        acc = _leaky(acc)
    elif post == "clamp_scale":
        acc = jnp.clip(acc, 0.0, 1.0) * 2.0 - 1.0

    y = acc.reshape(H, W, o_ref.shape[-1])
    if has_res:
        y = y + res_ref[0]
    o_ref[0] = y.astype(o_ref.dtype)


def conv3x3(x, w2d, b2d, *, pre="none", post="none", residual=None):
    """x: (N,H,W,C) NHWC; w2d: (9*Cin_pad, Cout_pad); b2d: (1, Cout_pad)."""
    N, H, W, C = x.shape
    K, cout_p = w2d.shape
    cin_p = K // 9
    assert K == 9 * cin_p and cin_p % LANE == 0 and cin_p >= C

    has_res = residual is not None
    kernel = functools.partial(_conv3x3_kernel, H=H, W=W, C=C,
                               pre=pre, post=post, has_res=has_res)

    in_specs = [
        pl.BlockSpec((1, H, W, C), lambda n: (n, 0, 0, 0)),
        pl.BlockSpec((K, cout_p), lambda n: (0, 0)),
        pl.BlockSpec((1, cout_p), lambda n: (0, 0)),
    ]
    args = [x, w2d, b2d]
    if has_res:
        in_specs.append(pl.BlockSpec((1, H, W, cout_p), lambda n: (n, 0, 0, 0)))
        args.append(residual)

    return pl.pallas_call(
        kernel,
        out_shape=jax.ShapeDtypeStruct((N, H, W, cout_p), jnp.float32),
        grid=(N,),
        in_specs=in_specs,
        out_specs=pl.BlockSpec((1, H, W, cout_p), lambda n: (n, 0, 0, 0)),
        scratch_shapes=[pltpu.VMEM((H + 2, W + 2, cin_p), jnp.float32)],
        compiler_params=pltpu.CompilerParams(
            dimension_semantics=("parallel",),
            vmem_limit_bytes=VMEM_LIMIT),
    )(*args)


# ----------------------------------------------------------------------------
# Fused ResidualDenseBlock_5C: 5 convs + dense concat + LeakyReLUs + residual
# in ONE pallas_call.  The running concat [x | x1 | x2 | x3 | x4 | zeros] lives
# in a (H+2, W+2, CB) VMEM scratch (CB = round_up(nf+4*gc, 128)); every conv
# reads the full CB channels with zero-padded weight rows for the not-yet-
# written slots, which is numerically identical to the channel-prefix conv.
# ----------------------------------------------------------------------------
def _rdb_kernel(x_ref, w1, b1, w2, b2, w3, b3, w4, b4, w5, b5, *rest,
                H, W, nf, gc, has_res):
    if has_res:
        res_ref, o_ref, buf_ref = rest
    else:
        o_ref, buf_ref = rest
    cp = x_ref.shape[-1]
    cb = buf_ref.shape[2]

    buf_ref[...] = jnp.zeros(buf_ref.shape, buf_ref.dtype)
    xv = x_ref[0]
    buf_ref[1:H + 1, 1:W + 1, 0:cp] = xv

    def im2col():
        cols = [buf_ref[ky:ky + H, kx:kx + W, :]
                for ky in range(3) for kx in range(3)]
        return jnp.concatenate(cols, axis=-1).reshape(H * W, 9 * cb)

    off = nf
    for w_ref, b_ref in ((w1, b1), (w2, b2), (w3, b3), (w4, b4)):
        a = jnp.dot(im2col(), w_ref[...], preferred_element_type=jnp.float32)
        a = _leaky(a + b_ref[0])
        # write x_i into its channel slice of the VMEM concat buffer
        buf_ref[1:H + 1, 1:W + 1, off:off + gc] = a[:, :gc].reshape(H, W, gc)
        off += gc

    a5 = jnp.dot(im2col(), w5[...], preferred_element_type=jnp.float32) + b5[0]
    y = a5.reshape(H, W, cp) * 0.2 + xv        # RDB residual, fused
    if has_res:
        y = y * 0.2 + res_ref[0]               # enclosing-RRDB residual, fused
    o_ref[0] = y.astype(o_ref.dtype)


def rdb_block(x, rdb_params, *, nf, gc, residual=None):
    """One full ResidualDenseBlock_5C as a single pallas_call."""
    N, H, W, cp = x.shape
    (w1, b1), (w2, b2), (w3, b3), (w4, b4), (w5, b5) = rdb_params
    cb = w1.shape[0] // 9
    assert cb % LANE == 0 and cb >= cp and w5.shape[1] == cp

    has_res = residual is not None
    kernel = functools.partial(_rdb_kernel, H=H, W=W, nf=nf, gc=gc,
                               has_res=has_res)

    act_spec = pl.BlockSpec((1, H, W, cp), lambda n: (n, 0, 0, 0))
    in_specs = [act_spec]
    args = [x]
    for w, b in ((w1, b1), (w2, b2), (w3, b3), (w4, b4), (w5, b5)):
        in_specs.append(pl.BlockSpec(w.shape, lambda n: (0, 0)))
        in_specs.append(pl.BlockSpec(b.shape, lambda n: (0, 0)))
        args += [w, b]
    if has_res:
        in_specs.append(act_spec)
        args.append(residual)

    return pl.pallas_call(
        kernel,
        out_shape=jax.ShapeDtypeStruct((N, H, W, cp), jnp.float32),
        grid=(N,),
        in_specs=in_specs,
        out_specs=act_spec,
        scratch_shapes=[pltpu.VMEM((H + 2, W + 2, cb), jnp.float32)],
        compiler_params=pltpu.CompilerParams(
            dimension_semantics=("parallel",),
            vmem_limit_bytes=VMEM_LIMIT),
    )(*args)


# ----------------------------------------------------------------------------
# Parameter construction (synthetic, deterministic).  Weights are created in
# HWIO, then zero-padded to lane-dense sizes and flattened to (9*Cin_p, Cout_p)
# matching the in-kernel im2col column ordering ((ky*3+kx)*Cin_p + cin).
# ----------------------------------------------------------------------------
def _pack_conv(w_hwio, b, cin_p, cout_p):
    kh, kw, cin, cout = w_hwio.shape
    wp = jnp.zeros((kh, kw, cin_p, cout_p), jnp.float32)
    wp = wp.at[:, :, :cin, :cout].set(w_hwio)
    bp = jnp.zeros((cout_p,), jnp.float32).at[:cout].set(b)
    return wp.reshape(kh * kw * cin_p, cout_p), bp.reshape(1, cout_p)


def _make_conv(key, cin, cout, cin_p, cout_p):
    kw_, kb = jax.random.split(key)
    w = jax.random.normal(kw_, (3, 3, cin, cout), jnp.float32) * 0.05
    b = jax.random.normal(kb, (cout,), jnp.float32) * 0.05
    return _pack_conv(w, b, cin_p, cout_p)


def make_rrdbnet_params(key, input_channel, num_feature, output_channel,
                        num_of_blocks, scaling_factor, gc=32):
    nf = num_feature
    nf_p = _rup(nf)
    cb = _rup(nf + 4 * gc)                     # RDB concat-buffer channels
    keys = iter(jax.random.split(key, 8 + 15 * num_of_blocks))

    params = {
        "nf": nf, "gc": gc, "output_channel": output_channel,
        "num_down": int(scaling_factor ** 0.5),
    }
    params["conv_first"] = _make_conv(next(keys), input_channel, nf,
                                      _rup(input_channel), nf_p)

    def make_rdb():
        cins = [nf, nf + gc, nf + 2 * gc, nf + 3 * gc, nf + 4 * gc]
        couts = [gc, gc, gc, gc, nf]
        return [_make_conv(next(keys), ci, co, cb, _rup(co))
                for ci, co in zip(cins, couts)]

    params["trunk"] = [[make_rdb() for _ in range(3)]
                       for _ in range(num_of_blocks)]
    params["trunk_conv"] = _make_conv(next(keys), nf, nf, nf_p, nf_p)
    # nn.Sequential(*[lrelu, conv] * num_down) repeats the SAME conv module,
    # so the conv weights are shared across all num_down applications.
    params["output_down_conv"] = _make_conv(next(keys), nf, nf, nf_p, nf_p)
    params["conv_last"] = _make_conv(next(keys), nf, output_channel,
                                     nf_p, _rup(output_channel))
    # TODO(synk): self.upconv1 is defined in __init__ but never used in
    # forward(), so it is intentionally omitted here.
    return params


# ----------------------------------------------------------------------------
# Forward pass (NHWC internally with lane-padded channels; NCHW at the API
# boundary like PyTorch)
# ----------------------------------------------------------------------------
def rrdbnet_forward(x_nchw, params):
    nf, gc = params["nf"], params["gc"]
    x = jnp.transpose(x_nchw, (0, 2, 3, 1)).astype(jnp.float32)   # NCHW -> NHWC

    wf, bf = params["conv_first"]
    fea_first = fea = conv3x3(x, wf, bf, pre="in_norm")   # conv_first((x+1)/2)

    feas = []
    for rrdb in params["trunk"]:
        rrdb_in = fea
        fea = rdb_block(fea, rrdb[0], nf=nf, gc=gc)
        fea = rdb_block(fea, rrdb[1], nf=nf, gc=gc)
        # third RDB also applies the enclosing RRDB residual: out*0.2 + x
        fea = rdb_block(fea, rrdb[2], nf=nf, gc=gc, residual=rrdb_in)
        feas.append(fea)

    wt, bt = params["trunk_conv"]
    fea = conv3x3(fea, wt, bt, residual=fea_first)        # fea_first + trunk
    feas.append(fea)

    wd, bd = params["output_down_conv"]
    for _ in range(params["num_down"]):
        fea = conv3x3(fea, wd, bd, pre="lrelu")           # Sequential[lrelu, conv]

    wl, bl = params["conv_last"]
    out = conv3x3(fea, wl, bl, pre="lrelu", post="clamp_scale")

    # strip lane padding, back to NCHW
    out = out[..., :params["output_channel"]]
    feas_cat = jnp.concatenate([f[..., :nf] for f in feas], axis=-1)
    return (jnp.transpose(out, (0, 3, 1, 2)),
            jnp.transpose(feas_cat, (0, 3, 1, 2)))


if __name__ == "__main__":
    # small, module-consistent configuration
    input_channel = 3
    num_feature = 8
    output_channel = 3
    num_of_blocks = 1
    scaling_factor = 4        # -> num_down = 2
    gc = 4

    key = jax.random.PRNGKey(0)
    k_param, k_x, k_cx, k_cw, k_cb = jax.random.split(key, 5)

    # --- quick smoke-test: fused Pallas conv vs XLA conv (loose f32 tol) ---
    xc = jax.random.uniform(k_cx, (2, 16, 16, 8), jnp.float32,
                            minval=-1.0, maxval=1.0)
    wc = jax.random.normal(k_cw, (3, 3, 8, 8), jnp.float32) * 0.05
    bc = jax.random.normal(k_cb, (8,), jnp.float32) * 0.05
    w2d, b2d = _pack_conv(wc, bc, _rup(8), _rup(8))
    got = conv3x3(xc, w2d, b2d)[..., :8]
    ref = jax.lax.conv_general_dilated(
        xc, wc, window_strides=(1, 1), padding="SAME",
        dimension_numbers=("NHWC", "HWIO", "NHWC"),
        precision=jax.lax.Precision.HIGHEST) + bc
    assert float(jnp.max(jnp.abs(got - ref))) < 5e-2

    params = make_rrdbnet_params(k_param, input_channel, num_feature,
                                 output_channel, num_of_blocks,
                                 scaling_factor, gc=gc)

    # NCHW input in [-1, 1], matching PyTorch conventions
    x = jax.random.uniform(k_x, (2, input_channel, 16, 16),
                           jnp.float32, minval=-1.0, maxval=1.0)

    out, feas_cat = rrdbnet_forward(x, params)
    out = jax.block_until_ready(out)
    feas_cat = jax.block_until_ready(feas_cat)

    assert out.shape == (2, output_channel, 16, 16)
    assert feas_cat.shape == (2, num_feature * (num_of_blocks + 1), 16, 16)
    print("KERNEL_OK")
</pallas_src>

<mosaic_0001>
module attributes {stable_mosaic.version = 11 : i64} {
  func.func @_conv3x3_kernel(%arg0: i32, %arg1: memref<1x16x16x8xf32, #tpu.memory_space<vmem>>, %arg2: memref<1152x128xf32, #tpu.memory_space<vmem>>, %arg3: memref<1x128xf32, #tpu.memory_space<vmem>>, %arg4: memref<1x16x16x128xf32, #tpu.memory_space<vmem>>, %arg5: memref<18x18x128xf32, #tpu.memory_space<vmem>>) attributes {dimension_semantics = [#tpu.dimension_semantics<parallel>], iteration_bounds = array<i64: 2>, scalar_prefetch = 0 : i64, scratch_operands = 1 : i64, tpu.core_type = #tpu.core_type<tc>, window_params = [{transform_indices = @transform_0, window_bounds = array<i64: 1, 16, 16, 8>}, {pipeline_mode = #tpu.pipeline_mode<synchronous>, transform_indices = @transform_1, window_bounds = array<i64: 1152, 128>}, {pipeline_mode = #tpu.pipeline_mode<synchronous>, transform_indices = @transform_2, window_bounds = array<i64: 1, 128>}, {transform_indices = @transform_3, window_bounds = array<i64: 1, 16, 16, 128>}]} {
    %cst = arith.constant 0.000000e+00 : f32
    %0 = vector.broadcast %cst : f32 to vector<18x18x128xf32>
    %c0 = arith.constant 0 : index
    %c0_0 = arith.constant 0 : index
    %c0_1 = arith.constant 0 : index
    %1 = vector.load %arg5[%c0, %c0_0, %c0_1] : memref<18x18x128xf32, #tpu.memory_space<vmem>>, vector<18x18x128xf32>
    tpu.vector_store %arg5[%c0, %c0_0, %c0_1], %0 {strides = array<i32>} : memref<18x18x128xf32, #tpu.memory_space<vmem>>, vector<18x18x128xf32>,
    %c0_2 = arith.constant 0 : index
    %c0_3 = arith.constant 0 : index
    %c0_4 = arith.constant 0 : index
    %c0_5 = arith.constant 0 : index
    %2 = vector.load %arg1[%c0_2, %c0_3, %c0_4, %c0_5] : memref<1x16x16x8xf32, #tpu.memory_space<vmem>>, vector<1x16x16x8xf32>
    %3 = vector.shape_cast %2 : vector<1x16x16x8xf32> to vector<16x16x8xf32>
    %c1 = arith.constant 1 : index
    %c1_6 = arith.constant 1 : index
    %c0_7 = arith.constant 0 : index
    %4 = vector.load %arg5[%c1, %c1_6, %c0_7] : memref<18x18x128xf32, #tpu.memory_space<vmem>>, vector<16x16x8xf32>
    tpu.vector_store %arg5[%c1, %c1_6, %c0_7], %3 {strides = array<i32>} : memref<18x18x128xf32, #tpu.memory_space<vmem>>, vector<16x16x8xf32>,
    %c0_8 = arith.constant 0 : index
    %c0_9 = arith.constant 0 : index
    %c0_10 = arith.constant 0 : index
    %5 = vector.load %arg5[%c0_8, %c0_9, %c0_10] : memref<18x18x128xf32, #tpu.memory_space<vmem>>, vector<16x16x128xf32>
    %c0_11 = arith.constant 0 : index
    %c1_12 = arith.constant 1 : index
    %c0_13 = arith.constant 0 : index
    %6 = vector.load %arg5[%c0_11, %c1_12, %c0_13] : memref<18x18x128xf32, #tpu.memory_space<vmem>>, vector<16x16x128xf32>
    %c0_14 = arith.constant 0 : index
    %c2 = arith.constant 2 : index
    %c0_15 = arith.constant 0 : index
    %7 = vector.load %arg5[%c0_14, %c2, %c0_15] : memref<18x18x128xf32, #tpu.memory_space<vmem>>, vector<16x16x128xf32>
    %c1_16 = arith.constant 1 : index
    %c0_17 = arith.constant 0 : index
    %c0_18 = arith.constant 0 : index
    %8 = vector.load %arg5[%c1_16, %c0_17, %c0_18] : memref<18x18x128xf32, #tpu.memory_space<vmem>>, vector<16x16x128xf32>
    %c1_19 = arith.constant 1 : index
    %c1_20 = arith.constant 1 : index
    %c0_21 = arith.constant 0 : index
    %9 = vector.load %arg5[%c1_19, %c1_20, %c0_21] : memref<18x18x128xf32, #tpu.memory_space<vmem>>, vector<16x16x128xf32>
    %c1_22 = arith.constant 1 : index
    %c2_23 = arith.constant 2 : index
    %c0_24 = arith.constant 0 : index
    %10 = vector.load %arg5[%c1_22, %c2_23, %c0_24] : memref<18x18x128xf32, #tpu.memory_space<vmem>>, vector<16x16x128xf32>
    %c2_25 = arith.constant 2 : index
    %c0_26 = arith.constant 0 : index
    %c0_27 = arith.constant 0 : index
    %11 = vector.load %arg5[%c2_25, %c0_26, %c0_27] : memref<18x18x128xf32, #tpu.memory_space<vmem>>, vector<16x16x128xf32>
    %c2_28 = arith.constant 2 : index
    %c1_29 = arith.constant 1 : index
    %c0_30 = arith.constant 0 : index
    %12 = vector.load %arg5[%c2_28, %c1_29, %c0_30] : memref<18x18x128xf32, #tpu.memory_space<vmem>>, vector<16x16x128xf32>
    %c2_31 = arith.constant 2 : index
    %c2_32 = arith.constant 2 : index
    %c0_33 = arith.constant 0 : index
    %13 = vector.load %arg5[%c2_31, %c2_32, %c0_33] : memref<18x18x128xf32, #tpu.memory_space<vmem>>, vector<16x16x128xf32>
    %14 = tpu.concatenate %5, %6, %7, %8, %9, %10, %11, %12, %13 in 2 : vector<16x16x128xf32>, vector<16x16x128xf32>, vector<16x16x128xf32>, vector<16x16x128xf32>, vector<16x16x128xf32>, vector<16x16x128xf32>, vector<16x16x128xf32>, vector<16x16x128xf32>, vector<16x16x128xf32> -> vector<16x16x1152xf32>
    %15 = vector.shape_cast %14 : vector<16x16x1152xf32> to vector<256x1152xf32>
    %c0_34 = arith.constant 0 : index
    %c0_35 = arith.constant 0 : index
    %16 = vector.load %arg2[%c0_34, %c0_35] : memref<1152x128xf32, #tpu.memory_space<vmem>>, vector<1152x128xf32>
    %cst_36 = arith.constant dense<0.000000e+00> : vector<256x128xf32>
    %17 = tpu.matmul %15, %16, %cst_36 {dimension_numbers = #tpu.dot_dimension_numbers<[1], [0], [0], [1], [0, 0, 1, 1], [], []>} : vector<256x1152xf32>, vector<1152x128xf32>, vector<256x128xf32> -> vector<256x128xf32>
    %c0_37 = arith.constant 0 : index
    %c0_38 = arith.constant 0 : index
    %18 = vector.load %arg3[%c0_37, %c0_38] : memref<1x128xf32, #tpu.memory_space<vmem>>, vector<1x128xf32>
    %19 = vector.shape_cast %18 : vector<1x128xf32> to vector<128xf32>
    %20 = vector.shape_cast %19 : vector<128xf32> to vector<1x128xf32>
    %21 = vector.broadcast %20 : vector<1x128xf32> to vector<256x128xf32>
    %22 = arith.addf %17, %21 : vector<256x128xf32>
    %23 = vector.shape_cast %22 : vector<256x128xf32> to vector<16x16x128xf32>
    %c0_39 = arith.constant 0 : index
    %c0_40 = arith.constant 0 : index
    %c0_41 = arith.constant 0 : index
    %c0_42 = arith.constant 0 : index
    %24 = vector.load %arg4[%c0_39, %c0_40, %c0_41, %c0_42] : memref<1x16x16x128xf32, #tpu.memory_space<vmem>>, vector<1x16x16x128xf32>
    %25 = vector.shape_cast %24 : vector<1x16x16x128xf32> to vector<16x16x128xf32>
    %26 = vector.shape_cast %23 : vector<16x16x128xf32> to vector<1x16x16x128xf32>
    tpu.vector_store %arg4[%c0_39, %c0_40, %c0_41, %c0_42], %26 {strides = array<i32>} : memref<1x16x16x128xf32, #tpu.memory_space<vmem>>, vector<1x16x16x128xf32>,
    return
  }
  func.func @transform_0(%arg0: i32) -> (i32, i32, i32, i32) {
    %c0_i32 = arith.constant 0 : i32
    %c0_i32_0 = arith.constant 0 : i32
    %c0_i32_1 = arith.constant 0 : i32
    %c0_i32_2 = arith.constant 0 : i32
    return %arg0, %c0_i32, %c0_i32_0, %c0_i32_1 : i32, i32, i32, i32
  }
  func.func @transform_1(%arg0: i32) -> (i32, i32) {
    %c0_i32 = arith.constant 0 : i32
    %c0_i32_0 = arith.constant 0 : i32
    %c0_i32_1 = arith.constant 0 : i32
    return %c0_i32, %c0_i32_0 : i32, i32
  }
  func.func @transform_2(%arg0: i32) -> (i32, i32) {
    %c0_i32 = arith.constant 0 : i32
    %c0_i32_0 = arith.constant 0 : i32
    %c0_i32_1 = arith.constant 0 : i32
    return %c0_i32, %c0_i32_0 : i32, i32
  }
  func.func @transform_3(%arg0: i32) -> (i32, i32, i32, i32) {
    %c0_i32 = arith.constant 0 : i32
    %c0_i32_0 = arith.constant 0 : i32
    %c0_i32_1 = arith.constant 0 : i32
    %c0_i32_2 = arith.constant 0 : i32
    return %arg0, %c0_i32, %c0_i32_0, %c0_i32_1 : i32, i32, i32, i32
  }
}

</mosaic_0001>

<llo_original>
// kernel: tpu_custom_call.1
$region0: #{tpu_custom_call.1}
  #allocation0 [shape = 'u32[]', space=smem, size = 0x4, offset = 0x4, fixed_abs, tag = 'smem constant byte address 0x4 - core index']
  #allocation1 [shape = 'u32[144,128]{1,0:T(1,128)}', space=vmem, size = 0x12000, scoped, tag = 'internal scratch']
  #allocation2 [shape = 'f32[18,18,128]{2,1,0:T(8,128)}', space=vmem, size = 0x36000, scoped, tag = 'scratch operand']
  %s0 = inlined_call_operand.hbm [shape: f32[2,16,16,8], index: 0, kind: input, shape index: {}]
  %s1 = inlined_call_operand.hbm [shape: f32[1152,128], index: 1, kind: input, shape index: {}]
  %s2 = inlined_call_operand.hbm [shape: f32[1,128], index: 2, kind: input, shape index: {}]
  %s3 = inlined_call_operand.hbm [shape: f32[2,16,16,128], index: 3, kind: output, shape index: {}]
  %s4 = sld [smem:[#allocation0]]
  $region57: #{tpu_custom_call.1} parent=0
    _
  %s6 = ssub.s32 1, %s4
  %s7 = scalar_select 0, %s6, %s4
  $region1: #{tpu_custom_call.1} parent=0
    #allocation3 [shape = 'u8[262144]{0}', space=vmem, size = 0x40000, scoped, tag = 'input window, operand 0']
    #allocation4 [shape = 's32[2]{0}', space=sflag, size = 0x8, scoped, tag = 'scoped memory for tpu_custom_call.1']
    #allocation5 [shape = 's32[2]{0}', space=sflag, size = 0x8, scoped, tag = 'scoped memory for tpu_custom_call.1']
    #allocation6 [shape = 'u8[589824]{0}', space=vmem, size = 0x90000, scoped, tag = 'input window, operand 1, single buffered']
    #allocation7 [shape = 's32[1]{0}', space=sflag, size = 0x4, scoped, tag = 'scoped memory for tpu_custom_call.1']
    #allocation8 [shape = 'u8[512]{0}', space=vmem, size = 0x400, scoped, tag = 'input window, operand 2, single buffered']
    #allocation9 [shape = 'u8[262144]{0}', space=vmem, size = 0x40000, scoped, tag = 'output window, operand 0']
    %8 = vsyncpa [#allocation4], 0
    %s9 = scalar_lea.sflag [#allocation4], 1
    %10 = vsyncpa %s9, 0
    %11 = vsyncpa [#allocation7], 0
    %12 = vsyncpa [#allocation5], 0
    %s13 = scalar_lea.sflag [#allocation5], 1
    %14 = vsyncpa %s13, 0
    loop: start=0, step=1, limit=4
    $region2: #{tpu_custom_call.1} parent=1 // loop_pre_header
      _
    $region3: #{tpu_custom_call.1} parent=1 // loop_header
      %s16 = sphi 0, %s20
      %p17 = scmp.ge.s32.totalorder %s16, 4
      %s26 = sphi 0, %s28
      %s29 = sphi 0, %s26
      %s30 = sphi 0, %s29
      %s46 = sphi 0, %s30
      %s50 = sphi 0, %s50
      %s52 = sphi 0, %s50
      %s53 = sphi 0, %s52
      %s67 = sphi 0, %s53
      %s71 = sphi 0, %s71
      %s73 = sphi 0, %s71
      %s74 = sphi 0, %s73
      %s88 = sphi 0, %s74
      %s94 = sphi 0, %s96
      %s97 = sphi 0, %s94
      %s98 = sphi 0, %s97
      %s114 = sphi 0, %s98
    $region4: #{tpu_custom_call.1} parent=1 // loop_header_branch
      %19 = sbr.rel (%p17) target = $region8
    $region5: #{tpu_custom_call.1} parent=1 // loop_body
      %s21 = ssub.s32 %s16, 1
      %s22 = ssub.s32 %s16, 2
      %s23 = sadd.s32 %s16, 1
      %s24 = ssub.s32 %s16, %s23
      %p25 = scmp.eq.s32.totalorder %s24, 0
      %s27 = sadd.s32 %s26, 1
      %s28 = scalar_select %p25, %s26, %s27
      %p31 = pneg %p25
      %p32 = scmp.eq.s32.totalorder %s16, 1
      %p33 = por %p31, %p32
      %p34 = scmp.ne.s32.totalorder %s26, %s29
      %p35 = scmp.eq.s32.totalorder %s16, 0
      %p36 = por %p34, %p35
      %p37 = scmp.ne.s32.totalorder %s26, %s29
      %p38 = scmp.eq.s32.totalorder %s21, 1
      %p39 = por %p37, %p38
      %p40 = scmp.ne.s32.totalorder %s29, %s30
      %p41 = scmp.eq.s32.totalorder %s21, 0
      %p42 = por %p40, %p41
      %p43 = scmp.ne.s32.totalorder %s29, %s30
      %p44 = scmp.eq.s32.totalorder %s22, 1
      %p45 = por %p43, %p44
      %p47 = scmp.ne.s32.totalorder %s30, %s46
      %p48 = scmp.eq.s32.totalorder %s22, 0
      %p49 = por %p47, %p48
      %s51 = sadd.s32 %s50, 1
      %p54 = scmp.eq.s32.totalorder %s16, 1
      %p55 = scmp.ne.s32.totalorder %s50, %s52
      %p56 = scmp.eq.s32.totalorder %s16, 0
      %p57 = por %p55, %p56
      %p58 = scmp.ne.s32.totalorder %s50, %s52
      %p59 = scmp.eq.s32.totalorder %s21, 1
      %p60 = por %p58, %p59
      %p61 = scmp.ne.s32.totalorder %s52, %s53
      %p62 = scmp.eq.s32.totalorder %s21, 0
      %p63 = por %p61, %p62
      %p64 = scmp.ne.s32.totalorder %s52, %s53
      %p65 = scmp.eq.s32.totalorder %s22, 1
      %p66 = por %p64, %p65
      %p68 = scmp.ne.s32.totalorder %s53, %s67
      %p69 = scmp.eq.s32.totalorder %s22, 0
      %p70 = por %p68, %p69
      %s72 = sadd.s32 %s71, 1
      %p75 = scmp.eq.s32.totalorder %s16, 1
      %p76 = scmp.ne.s32.totalorder %s71, %s73
      %p77 = scmp.eq.s32.totalorder %s16, 0
      %p78 = por %p76, %p77
      %p79 = scmp.ne.s32.totalorder %s71, %s73
      %p80 = scmp.eq.s32.totalorder %s21, 1
      %p81 = por %p79, %p80
      %p82 = scmp.ne.s32.totalorder %s73, %s74
      %p83 = scmp.eq.s32.totalorder %s21, 0
      %p84 = por %p82, %p83
      %p85 = scmp.ne.s32.totalorder %s73, %s74
      %p86 = scmp.eq.s32.totalorder %s22, 1
      %p87 = por %p85, %p86
      %p89 = scmp.ne.s32.totalorder %s74, %s88
      %p90 = scmp.eq.s32.totalorder %s22, 0
      %p91 = por %p89, %p90
      %s92 = ssub.s32 %s16, %s23
      %p93 = scmp.eq.s32.totalorder %s92, 0
      %s95 = sadd.s32 %s94, 1
      %s96 = scalar_select %p93, %s94, %s95
      %p99 = pneg %p93
      %p100 = scmp.eq.s32.totalorder %s16, 1
      %p101 = por %p99, %p100
      %p102 = scmp.ne.s32.totalorder %s94, %s97
      %p103 = scmp.eq.s32.totalorder %s16, 0
      %p104 = por %p102, %p103
      %p105 = scmp.ne.s32.totalorder %s94, %s97
      %p106 = scmp.eq.s32.totalorder %s21, 1
      %p107 = por %p105, %p106
      %p108 = scmp.ne.s32.totalorder %s97, %s98
      %p109 = scmp.eq.s32.totalorder %s21, 0
      %p110 = por %p108, %p109
      %p111 = scmp.ne.s32.totalorder %s97, %s98
      %p112 = scmp.eq.s32.totalorder %s22, 1
      %p113 = por %p111, %p112
      %p115 = scmp.ne.s32.totalorder %s98, %s114
      %p116 = scmp.eq.s32.totalorder %s22, 0
      %p117 = por %p115, %p116
      %p118 = scmp.le.s32.totalorder 1, %s16
      %p119 = scmp.lt.s32.totalorder %s16, 3
      %p120 = pnand %p118, %p119
      %p121 = pneg %p120
      // Predicated region
      $region9: #{tpu_custom_call.1} parent=5 // pred_check
        _
      $region10: #{tpu_custom_call.1} parent=5 // pred_check_branch
        %123 = sbr.rel (%p120) target = $region12
      $region11: #{tpu_custom_call.1} parent=5 // pred_region
        %s124 = ssub.s32 %s16, 1
        // Predicated region
        $region13: #{tpu_custom_call.1} parent=11 // pred_check
          %p125 = pneg %p63
        $region14: #{tpu_custom_call.1} parent=11 // pred_check_branch
          %127 = sbr.rel (%p125) target = $region16
        $region15: #{tpu_custom_call.1} parent=11 // pred_region
          %s129 = ssub.s32 18432, 18432
          %130 = vsyncadd [#allocation7], %s129
          %s131 = sshll.u32 [#allocation6], 4
          %s132 = int_to_ptr.vmem [resolvable:$true] %s131
          %137 = dma.hbm_to_vmem [thread:$0]  %s1, 18432, %s132, [#allocation7], 128, 128, 8
        $region16: #{tpu_custom_call.1} parent=11 // pred_fallthru
          _
        // Predicated region
        $region17: #{tpu_custom_call.1} parent=11 // pred_check
          %p138 = pneg %p84
        $region18: #{tpu_custom_call.1} parent=11 // pred_check_branch
          %140 = sbr.rel (%p138) target = $region20
        $region19: #{tpu_custom_call.1} parent=11 // pred_region
          %s142 = ssub.s32 16, 16
          %143 = vsyncadd [#allocation7], %s142
          %s145 = sshll.u32 [#allocation8], 4
          %s146 = int_to_ptr.vmem [resolvable:$true] %s145
          %148 = dma.hbm_to_vmem [thread:$0]  %s2, 16, %s146, [#allocation7]
        $region20: #{tpu_custom_call.1} parent=11 // pred_fallthru
          _
      $region12: #{tpu_custom_call.1} parent=5 // pred_fallthru
        _
      %p149 = scmp.lt.s32.totalorder %s16, 2
      // Predicated region
      $region21: #{tpu_custom_call.1} parent=5 // pred_check
        %p150 = pneg %p149
      $region22: #{tpu_custom_call.1} parent=5 // pred_check_branch
        %152 = sbr.rel (%p150) target = $region24
      $region23: #{tpu_custom_call.1} parent=5 // pred_region
        // Predicated region
        $region25: #{tpu_custom_call.1} parent=23 // pred_check
          %p153 = pneg %p36
        $region26: #{tpu_custom_call.1} parent=23 // pred_check_branch
          %155 = sbr.rel (%p153) target = $region28
        $region27: #{tpu_custom_call.1} parent=23 // pred_region
          %s156 = sand.u32 %s26, 1
          %s157 = scalar_lea.sflag [#allocation4], %s156
          %s158 = sand.u32 %s26, 1
          %s159 = smul.addr %s158, 256
          %s160 = scalar_lea.vmem [#allocation3], %s159
          %s162 = ssub.s32 4096, 4096
          %163 = vsyncadd %s157, %s162
          %s164 = smul.addr %s16, 32
          %s165 = smul.addr %s164, 128
          %s166 = scalar_lea.hbm %s0, %s165
          %s167 = sshll.u32 %s160, 4
          %s168 = int_to_ptr.vmem [resolvable:$true] %s167
          %173 = dma.hbm_to_vmem [thread:$0]  %s166, 4096, %s168, %s157, 128, 128, 8
        $region28: #{tpu_custom_call.1} parent=23 // pred_fallthru
          _
      $region24: #{tpu_custom_call.1} parent=5 // pred_fallthru
        _
      %p174 = scmp.le.s32.totalorder 1, %s16
      %p175 = scmp.lt.s32.totalorder %s16, 3
      %p176 = pnand %p174, %p175
      %p177 = pneg %p176
      // Predicated region
      $region29: #{tpu_custom_call.1} parent=5 // pred_check
        _
      $region30: #{tpu_custom_call.1} parent=5 // pred_check_branch
        %179 = sbr.rel (%p176) target = $region32
      $region31: #{tpu_custom_call.1} parent=5 // pred_region
        %s180 = ssub.s32 %s16, 1
        %s181 = sand.u32 %s29, 1
        %s182 = scalar_lea.sflag [#allocation4], %s181
        %s183 = sand.u32 %s29, 1
        %s184 = smul.addr %s183, 256
        %s185 = scalar_lea.vmem [#allocation3], %s184
        // Predicated region
        $region33: #{tpu_custom_call.1} parent=31 // pred_check
          %p186 = pneg %p42
        $region34: #{tpu_custom_call.1} parent=31 // pred_check_branch
          %188 = sbr.rel (%p186) target = $region36
        $region35: #{tpu_custom_call.1} parent=31 // pred_region
          %189 = dma.done %s182, 4096
        $region36: #{tpu_custom_call.1} parent=31 // pred_fallthru
          _
        // Predicated region
        $region37: #{tpu_custom_call.1} parent=31 // pred_check
          %p190 = pneg %p63
        $region38: #{tpu_custom_call.1} parent=31 // pred_check_branch
          %192 = sbr.rel (%p190) target = $region40
        $region39: #{tpu_custom_call.1} parent=31 // pred_region
          %193 = dma.done [#allocation7], 18432
        $region40: #{tpu_custom_call.1} parent=31 // pred_fallthru
          _
        // Predicated region
        $region41: #{tpu_custom_call.1} parent=31 // pred_check
          %p194 = pneg %p84
        $region42: #{tpu_custom_call.1} parent=31 // pred_check_branch
          %196 = sbr.rel (%p194) target = $region44
        $region43: #{tpu_custom_call.1} parent=31 // pred_region
          %197 = dma.done [#allocation7], 16
        $region44: #{tpu_custom_call.1} parent=31 // pred_fallthru
          _
        %s198 = sand.u32 %s29, 1
        %s199 = scalar_lea.sflag [#allocation4], %s198
        %s200 = sand.u32 %s29, 1
        %s201 = smul.addr %s200, 256
        %s202 = scalar_lea.vmem [#allocation3], %s201
        %p203 = pneg %p42
        %p204 = pneg %p39
        %p205 = pneg %p63
        %p206 = pneg %p60
        %p207 = pneg %p84
        %p208 = pneg %p81
        %p209 = pneg %p110
        %p210 = pneg %p107
        %s211 = sand.u32 %s97, 1
        %s212 = scalar_lea.sflag [#allocation5], %s211
        %s213 = sand.u32 %s97, 1
        %s214 = smul.addr %s213, 256
        %s215 = scalar_lea.vmem [#allocation9], %s214
        %216 = vst [vmem:[#allocation2] sm:$0xff] 0.0
        %217 = vst [vmem:[#allocation2 + $0x8] sm:$0xff] 0.0
        %218 = vst [vmem:[#allocation2 + $0x10] sm:$0x3] 0.0
        %219 = vst [vmem:[#allocation2 + $0x18] sm:$0xff] 0.0
        %220 = vst [vmem:[#allocation2 + $0x20] sm:$0xff] 0.0
        %221 = vst [vmem:[#allocation2 + $0x28] sm:$0x3] 0.0
        %222 = vst [vmem:[#allocation2 + $0x30] sm:$0xff] 0.0
        %223 = vst [vmem:[#allocation2 + $0x38] sm:$0xff] 0.0
        %224 = vst [vmem:[#allocation2 + $0x40] sm:$0x3] 0.0
        %225 = vst [vmem:[#allocation2 + $0x48] sm:$0xff] 0.0
        %226 = vst [vmem:[#allocation2 + $0x50] sm:$0xff] 0.0
        %227 = vst [vmem:[#allocation2 + $0x58] sm:$0x3] 0.0
        %228 = vst [vmem:[#allocation2 + $0x60] sm:$0xff] 0.0
        %229 = vst [vmem:[#allocation2 + $0x68] sm:$0xff] 0.0
        %230 = vst [vmem:[#allocation2 + $0x70] sm:$0x3] 0.0
        %231 = vst [vmem:[#allocation2 + $0x78] sm:$0xff] 0.0
        %232 = vst [vmem:[#allocation2 + $0x80] sm:$0xff] 0.0
        %233 = vst [vmem:[#allocation2 + $0x88] sm:$0x3] 0.0
        %234 = vst [vmem:[#allocation2 + $0x90] sm:$0xff] 0.0
        %235 = vst [vmem:[#allocation2 + $0x98] sm:$0xff] 0.0
        %236 = vst [vmem:[#allocation2 + $0xa0] sm:$0x3] 0.0
        %237 = vst [vmem:[#allocation2 + $0xa8] sm:$0xff] 0.0
        %238 = vst [vmem:[#allocation2 + $0xb0] sm:$0xff] 0.0
        %239 = vst [vmem:[#allocation2 + $0xb8] sm:$0x3] 0.0
        %240 = vst [vmem:[#allocation2 + $0xc0] sm:$0xff] 0.0
        %241 = vst [vmem:[#allocation2 + $0xc8] sm:$0xff] 0.0
        %242 = vst [vmem:[#allocation2 + $0xd0] sm:$0x3] 0.0
        %243 = vst [vmem:[#allocation2 + $0xd8] sm:$0xff] 0.0
        %244 = vst [vmem:[#allocation2 + $0xe0] sm:$0xff] 0.0
        %245 = vst [vmem:[#allocation2 + $0xe8] sm:$0x3] 0.0
        %246 = vst [vmem:[#allocation2 + $0xf0] sm:$0xff] 0.0
        %247 = vst [vmem:[#allocation2 + $0xf8] sm:$0xff] 0.0
        %248 = vst [vmem:[#allocation2 + $0x100] sm:$0x3] 0.0
        %249 = vst [vmem:[#allocation2 + $0x108] sm:$0xff] 0.0
        %250 = vst [vmem:[#allocation2 + $0x110] sm:$0xff] 0.0
        %251 = vst [vmem:[#allocation2 + $0x118] sm:$0x3] 0.0
        %252 = vst [vmem:[#allocation2 + $0x120] sm:$0xff] 0.0
        %253 = vst [vmem:[#allocation2 + $0x128] sm:$0xff] 0.0
        %254 = vst [vmem:[#allocation2 + $0x130] sm:$0x3] 0.0
        %255 = vst [vmem:[#allocation2 + $0x138] sm:$0xff] 0.0
        %256 = vst [vmem:[#allocation2 + $0x140] sm:$0xff] 0.0
        %257 = vst [vmem:[#allocation2 + $0x148] sm:$0x3] 0.0
        %258 = vst [vmem:[#allocation2 + $0x150] sm:$0xff] 0.0
        %259 = vst [vmem:[#allocation2 + $0x158] sm:$0xff] 0.0
        %260 = vst [vmem:[#allocation2 + $0x160] sm:$0x3] 0.0
        %261 = vst [vmem:[#allocation2 + $0x168] sm:$0xff] 0.0
        %262 = vst [vmem:[#allocation2 + $0x170] sm:$0xff] 0.0
        %263 = vst [vmem:[#allocation2 + $0x178] sm:$0x3] 0.0
        %264 = vst [vmem:[#allocation2 + $0x180] sm:$0xff] 0.0
        %265 = vst [vmem:[#allocation2 + $0x188] sm:$0xff] 0.0
        %266 = vst [vmem:[#allocation2 + $0x190] sm:$0x3] 0.0
        %267 = vst [vmem:[#allocation2 + $0x198] sm:$0xff] 0.0
        %268 = vst [vmem:[#allocation2 + $0x1a0] sm:$0xff] 0.0
        %269 = vst [vmem:[#allocation2 + $0x1a8] sm:$0x3] 0.0
        %v270 = vld [vmem:[%s185] sm:$0xff]
        %v271 = vld [vmem:[%s185 + $0x8] sm:$0xff]
        %v272 = vld [vmem:[%s185 + $0x10] sm:$0xff]
        %v273 = vld [vmem:[%s185 + $0x18] sm:$0xff]
        %v274 = vld [vmem:[%s185 + $0x20] sm:$0xff]
        %v275 = vld [vmem:[%s185 + $0x28] sm:$0xff]
        %v276 = vld [vmem:[%s185 + $0x30] sm:$0xff]
        %v277 = vld [vmem:[%s185 + $0x38] sm:$0xff]
        %v278 = vld [vmem:[%s185 + $0x40] sm:$0xff]
        %v279 = vld [vmem:[%s185 + $0x48] sm:$0xff]
        %v280 = vld [vmem:[%s185 + $0x50] sm:$0xff]
        %v281 = vld [vmem:[%s185 + $0x58] sm:$0xff]
        %v282 = vld [vmem:[%s185 + $0x60] sm:$0xff]
        %v283 = vld [vmem:[%s185 + $0x68] sm:$0xff]
        %v284 = vld [vmem:[%s185 + $0x70] sm:$0xff]
        %v285 = vld [vmem:[%s185 + $0x78] sm:$0xff]
        %v286 = vld [vmem:[%s185 + $0x80] sm:$0xff]
        %v287 = vld [vmem:[%s185 + $0x88] sm:$0xff]
        %v288 = vld [vmem:[%s185 + $0x90] sm:$0xff]
        %v289 = vld [vmem:[%s185 + $0x98] sm:$0xff]
        %v290 = vld [vmem:[%s185 + $0xa0] sm:$0xff]
        %v291 = vld [vmem:[%s185 + $0xa8] sm:$0xff]
        %v292 = vld [vmem:[%s185 + $0xb0] sm:$0xff]
        %v293 = vld [vmem:[%s185 + $0xb8] sm:$0xff]
        %v294 = vld [vmem:[%s185 + $0xc0] sm:$0xff]
        %v295 = vld [vmem:[%s185 + $0xc8] sm:$0xff]
        %v296 = vld [vmem:[%s185 + $0xd0] sm:$0xff]
        %v297 = vld [vmem:[%s185 + $0xd8] sm:$0xff]
        %v298 = vld [vmem:[%s185 + $0xe0] sm:$0xff]
        %v299 = vld [vmem:[%s185 + $0xe8] sm:$0xff]
        %v300 = vld [vmem:[%s185 + $0xf0] sm:$0xff]
        %v301 = vld [vmem:[%s185 + $0xf8] sm:$0xff]
        %s302 = scalar_lea.vmem [#allocation2], 24
        %vm303 = vcmask 64512
        %304 = vst.msk [vmem:[%s302 + $0x1] sm:$0xff] %vm303, %v270
        %305 = vst.msk [vmem:[%s302 + $0x9] sm:$0xff] %vm303, %v271
        %306 = vst.msk [vmem:[%s302 + $0x19] sm:$0xff] %vm303, %v272
        %307 = vst.msk [vmem:[%s302 + $0x21] sm:$0xff] %vm303, %v273
        %308 = vst.msk [vmem:[%s302 + $0x31] sm:$0xff] %vm303, %v274
        %309 = vst.msk [vmem:[%s302 + $0x39] sm:$0xff] %vm303, %v275
        %310 = vst.msk [vmem:[%s302 + $0x49] sm:$0xff] %vm303, %v276
        %311 = vst.msk [vmem:[%s302 + $0x51] sm:$0xff] %vm303, %v277
        %312 = vst.msk [vmem:[%s302 + $0x61] sm:$0xff] %vm303, %v278
        %313 = vst.msk [vmem:[%s302 + $0x69] sm:$0xff] %vm303, %v279
        %314 = vst.msk [vmem:[%s302 + $0x79] sm:$0xff] %vm303, %v280
        %315 = vst.msk [vmem:[%s302 + $0x81] sm:$0xff] %vm303, %v281
        %316 = vst.msk [vmem:[%s302 + $0x91] sm:$0xff] %vm303, %v282
        %317 = vst.msk [vmem:[%s302 + $0x99] sm:$0xff] %vm303, %v283
        %318 = vst.msk [vmem:[%s302 + $0xa9] sm:$0xff] %vm303, %v284
        %319 = vst.msk [vmem:[%s302 + $0xb1] sm:$0xff] %vm303, %v285
        %320 = vst.msk [vmem:[%s302 + $0xc1] sm:$0xff] %vm303, %v286
        %321 = vst.msk [vmem:[%s302 + $0xc9] sm:$0xff] %vm303, %v287
        %322 = vst.msk [vmem:[%s302 + $0xd9] sm:$0xff] %vm303, %v288
        %323 = vst.msk [vmem:[%s302 + $0xe1] sm:$0xff] %vm303, %v289
        %324 = vst.msk [vmem:[%s302 + $0xf1] sm:$0xff] %vm303, %v290
        %325 = vst.msk [vmem:[%s302 + $0xf9] sm:$0xff] %vm303, %v291
        %326 = vst.msk [vmem:[%s302 + $0x109] sm:$0xff] %vm303, %v292
        %327 = vst.msk [vmem:[%s302 + $0x111] sm:$0xff] %vm303, %v293
        %328 = vst.msk [vmem:[%s302 + $0x121] sm:$0xff] %vm303, %v294
        %329 = vst.msk [vmem:[%s302 + $0x129] sm:$0xff] %vm303, %v295
        %330 = vst.msk [vmem:[%s302 + $0x139] sm:$0xff] %vm303, %v296
        %331 = vst.msk [vmem:[%s302 + $0x141] sm:$0xff] %vm303, %v297
        %332 = vst.msk [vmem:[%s302 + $0x151] sm:$0xff] %vm303, %v298
        %333 = vst.msk [vmem:[%s302 + $0x159] sm:$0xff] %vm303, %v299
        %334 = vst.msk [vmem:[%s302 + $0x169] sm:$0xff] %vm303, %v300
        %335 = vst.msk [vmem:[%s302 + $0x171] sm:$0xff] %vm303, %v301
        %v336 = vld [vmem:[#allocation2] sm:$0xff]
        %v337 = vld [vmem:[#allocation2 + $0x8] sm:$0xff]
        %v338 = vld [vmem:[#allocation2 + $0x18] sm:$0xff]
        %v339 = vld [vmem:[#allocation2 + $0x20] sm:$0xff]
        %v340 = vld [vmem:[#allocation2 + $0x30] sm:$0xff]
        %v341 = vld [vmem:[#allocation2 + $0x38] sm:$0xff]
        %v342 = vld [vmem:[#allocation2 + $0x48] sm:$0xff]
        %v343 = vld [vmem:[#allocation2 + $0x50] sm:$0xff]
        %v344 = vld [vmem:[#allocation2 + $0x60] sm:$0xff]
        %v345 = vld [vmem:[#allocation2 + $0x68] sm:$0xff]
        %v346 = vld [vmem:[#allocation2 + $0x78] sm:$0xff]
        %v347 = vld [vmem:[#allocation2 + $0x80] sm:$0xff]
        %v348 = vld [vmem:[#allocation2 + $0x90] sm:$0xff]
        %v349 = vld [vmem:[#allocation2 + $0x98] sm:$0xff]
        %v350 = vld [vmem:[#allocation2 + $0xa8] sm:$0xff]
        %v351 = vld [vmem:[#allocation2 + $0xb0] sm:$0xff]
        %v352 = vld [vmem:[#allocation2 + $0xc0] sm:$0xff]
        %v353 = vld [vmem:[#allocation2 + $0xc8] sm:$0xff]
        %v354 = vld [vmem:[#allocation2 + $0xd8] sm:$0xff]
        %v355 = vld [vmem:[#allocation2 + $0xe0] sm:$0xff]
        %v356 = vld [vmem:[#allocation2 + $0xf0] sm:$0xff]
        %v357 = vld [vmem:[#allocation2 + $0xf8] sm:$0xff]
        %v358 = vld [vmem:[#allocation2 + $0x108] sm:$0xff]
        %v359 = vld [vmem:[#allocation2 + $0x110] sm:$0xff]
        %v360 = vld [vmem:[#allocation2 + $0x120] sm:$0xff]
        %v361 = vld [vmem:[#allocation2 + $0x128] sm:$0xff]
        %v362 = vld [vmem:[#allocation2 + $0x138] sm:$0xff]
        %v363 = vld [vmem:[#allocation2 + $0x140] sm:$0xff]
        %v364 = vld [vmem:[#allocation2 + $0x150] sm:$0xff]
        %v365 = vld [vmem:[#allocation2 + $0x158] sm:$0xff]
        %v366 = vld [vmem:[#allocation2 + $0x168] sm:$0xff]
        %v367 = vld [vmem:[#allocation2 + $0x170] sm:$0xff]
        %v368 = vld [vmem:[#allocation2 + $0x1] sm:$0xff]
        %v369 = vld [vmem:[#allocation2 + $0x9] sm:$0xff]
        %v370 = vld [vmem:[#allocation2 + $0x19] sm:$0xff]
        %v371 = vld [vmem:[#allocation2 + $0x21] sm:$0xff]
        %v372 = vld [vmem:[#allocation2 + $0x31] sm:$0xff]
        %v373 = vld [vmem:[#allocation2 + $0x39] sm:$0xff]
        %v374 = vld [vmem:[#allocation2 + $0x49] sm:$0xff]
        %v375 = vld [vmem:[#allocation2 + $0x51] sm:$0xff]
        %v376 = vld [vmem:[#allocation2 + $0x61] sm:$0xff]
        %v377 = vld [vmem:[#allocation2 + $0x69] sm:$0xff]
        %v378 = vld [vmem:[#allocation2 + $0x79] sm:$0xff]
        %v379 = vld [vmem:[#allocation2 + $0x81] sm:$0xff]
        %v380 = vld [vmem:[#allocation2 + $0x91] sm:$0xff]
        %v381 = vld [vmem:[#allocation2 + $0x99] sm:$0xff]
        %v382 = vld [vmem:[#allocation2 + $0xa9] sm:$0xff]
        %v383 = vld [vmem:[#allocation2 + $0xb1] sm:$0xff]
        %v384 = vld [vmem:[#allocation2 + $0xc1] sm:$0xff]
        %v385 = vld [vmem:[#allocation2 + $0xc9] sm:$0xff]
        %v386 = vld [vmem:[#allocation2 + $0xd9] sm:$0xff]
        %v387 = vld [vmem:[#allocation2 + $0xe1] sm:$0xff]
        %v388 = vld [vmem:[#allocation2 + $0xf1] sm:$0xff]
        %v389 = vld [vmem:[#allocation2 + $0xf9] sm:$0xff]
        %v390 = vld [vmem:[#allocation2 + $0x109] sm:$0xff]
        %v391 = vld [vmem:[#allocation2 + $0x111] sm:$0xff]
        %v392 = vld [vmem:[#allocation2 + $0x121] sm:$0xff]
        %v393 = vld [vmem:[#allocation2 + $0x129] sm:$0xff]
        %v394 = vld [vmem:[#allocation2 + $0x139] sm:$0xff]
        %v395 = vld [vmem:[#allocation2 + $0x141] sm:$0xff]
        %v396 = vld [vmem:[#allocation2 + $0x151] sm:$0xff]
        %v397 = vld [vmem:[#allocation2 + $0x159] sm:$0xff]
        %v398 = vld [vmem:[#allocation2 + $0x169] sm:$0xff]
        %v399 = vld [vmem:[#allocation2 + $0x171] sm:$0xff]
        %v400 = vld [vmem:[#allocation2 + $0x2] sm:$0xff]
        %v401 = vld [vmem:[#allocation2 + $0xa] sm:$0xff]
        %v402 = vld [vmem:[#allocation2 + $0x1a] sm:$0xff]
        %v403 = vld [vmem:[#allocation2 + $0x22] sm:$0xff]
        %v404 = vld [vmem:[#allocation2 + $0x32] sm:$0xff]
        %v405 = vld [vmem:[#allocation2 + $0x3a] sm:$0xff]
        %v406 = vld [vmem:[#allocation2 + $0x4a] sm:$0xff]
        %v407 = vld [vmem:[#allocation2 + $0x52] sm:$0xff]
        %v408 = vld [vmem:[#allocation2 + $0x62] sm:$0xff]
        %v409 = vld [vmem:[#allocation2 + $0x6a] sm:$0xff]
        %v410 = vld [vmem:[#allocation2 + $0x7a] sm:$0xff]
        %v411 = vld [vmem:[#allocation2 + $0x82] sm:$0xff]
        %v412 = vld [vmem:[#allocation2 + $0x92] sm:$0xff]
        %v413 = vld [vmem:[#allocation2 + $0x9a] sm:$0xff]
        %v414 = vld [vmem:[#allocation2 + $0xaa] sm:$0xff]
        %v415 = vld [vmem:[#allocation2 + $0xb2] sm:$0xff]
        %v416 = vld [vmem:[#allocation2 + $0xc2] sm:$0xff]
        %v417 = vld [vmem:[#allocation2 + $0xca] sm:$0xff]
        %v418 = vld [vmem:[#allocation2 + $0xda] sm:$0xff]
        %v419 = vld [vmem:[#allocation2 + $0xe2] sm:$0xff]
        %v420 = vld [vmem:[#allocation2 + $0xf2] sm:$0xff]
        %v421 = vld [vmem:[#allocation2 + $0xfa] sm:$0xff]
        %v422 = vld [vmem:[#allocation2 + $0x10a] sm:$0xff]
        %v423 = vld [vmem:[#allocation2 + $0x112] sm:$0xff]
        %v424 = vld [vmem:[#allocation2 + $0x122] sm:$0xff]
        %v425 = vld [vmem:[#allocation2 + $0x12a] sm:$0xff]
        %v426 = vld [vmem:[#allocation2 + $0x13a] sm:$0xff]
        %v427 = vld [vmem:[#allocation2 + $0x142] sm:$0xff]
        %v428 = vld [vmem:[#allocation2 + $0x152] sm:$0xff]
        %v429 = vld [vmem:[#allocation2 + $0x15a] sm:$0xff]
        %v430 = vld [vmem:[#allocation2 + $0x16a] sm:$0xff]
        %v431 = vld [vmem:[#allocation2 + $0x172] sm:$0xff]
        %v432 = vld [vmem:[%s302] sm:$0xff]
        %v433 = vld [vmem:[%s302 + $0x8] sm:$0xff]
        %v434 = vld [vmem:[%s302 + $0x18] sm:$0xff]
        %v435 = vld [vmem:[%s302 + $0x20] sm:$0xff]
        %v436 = vld [vmem:[%s302 + $0x30] sm:$0xff]
        %v437 = vld [vmem:[%s302 + $0x38] sm:$0xff]
        %v438 = vld [vmem:[%s302 + $0x48] sm:$0xff]
        %v439 = vld [vmem:[%s302 + $0x50] sm:$0xff]
        %v440 = vld [vmem:[%s302 + $0x60] sm:$0xff]
        %v441 = vld [vmem:[%s302 + $0x68] sm:$0xff]
        %v442 = vld [vmem:[%s302 + $0x78] sm:$0xff]
        %v443 = vld [vmem:[%s302 + $0x80] sm:$0xff]
        %v444 = vld [vmem:[%s302 + $0x90] sm:$0xff]
        %v445 = vld [vmem:[%s302 + $0x98] sm:$0xff]
        %v446 = vld [vmem:[%s302 + $0xa8] sm:$0xff]
        %v447 = vld [vmem:[%s302 + $0xb0] sm:$0xff]
        %v448 = vld [vmem:[%s302 + $0xc0] sm:$0xff]
        %v449 = vld [vmem:[%s302 + $0xc8] sm:$0xff]
        %v450 = vld [vmem:[%s302 + $0xd8] sm:$0xff]
        %v451 = vld [vmem:[%s302 + $0xe0] sm:$0xff]
        %v452 = vld [vmem:[%s302 + $0xf0] sm:$0xff]
        %v453 = vld [vmem:[%s302 + $0xf8] sm:$0xff]
        %v454 = vld [vmem:[%s302 + $0x108] sm:$0xff]
        %v455 = vld [vmem:[%s302 + $0x110] sm:$0xff]
        %v456 = vld [vmem:[%s302 + $0x120] sm:$0xff]
        %v457 = vld [vmem:[%s302 + $0x128] sm:$0xff]
        %v458 = vld [vmem:[%s302 + $0x138] sm:$0xff]
        %v459 = vld [vmem:[%s302 + $0x140] sm:$0xff]
        %v460 = vld [vmem:[%s302 + $0x150] sm:$0xff]
        %v461 = vld [vmem:[%s302 + $0x158] sm:$0xff]
        %v462 = vld [vmem:[%s302 + $0x168] sm:$0xff]
        %v463 = vld [vmem:[%s302 + $0x170] sm:$0xff]
        %v464 = vld [vmem:[%s302 + $0x1] sm:$0xff]
        %v465 = vld [vmem:[%s302 + $0x9] sm:$0xff]
        %v466 = vld [vmem:[%s302 + $0x19] sm:$0xff]
        %v467 = vld [vmem:[%s302 + $0x21] sm:$0xff]
        %v468 = vld [vmem:[%s302 + $0x31] sm:$0xff]
        %v469 = vld [vmem:[%s302 + $0x39] sm:$0xff]
        %v470 = vld [vmem:[%s302 + $0x49] sm:$0xff]
        %v471 = vld [vmem:[%s302 + $0x51] sm:$0xff]
        %v472 = vld [vmem:[%s302 + $0x61] sm:$0xff]
        %v473 = vld [vmem:[%s302 + $0x69] sm:$0xff]
        %v474 = vld [vmem:[%s302 + $0x79] sm:$0xff]
        %v475 = vld [vmem:[%s302 + $0x81] sm:$0xff]
        %v476 = vld [vmem:[%s302 + $0x91] sm:$0xff]
        %v477 = vld [vmem:[%s302 + $0x99] sm:$0xff]
        %v478 = vld [vmem:[%s302 + $0xa9] sm:$0xff]
        %v479 = vld [vmem:[%s302 + $0xb1] sm:$0xff]
        %v480 = vld [vmem:[%s302 + $0xc1] sm:$0xff]
        %v481 = vld [vmem:[%s302 + $0xc9] sm:$0xff]
        %v482 = vld [vmem:[%s302 + $0xd9] sm:$0xff]
        %v483 = vld [vmem:[%s302 + $0xe1] sm:$0xff]
        %v484 = vld [vmem:[%s302 + $0xf1] sm:$0xff]
        %v485 = vld [vmem:[%s302 + $0xf9] sm:$0xff]
        %v486 = vld [vmem:[%s302 + $0x109] sm:$0xff]
        %v487 = vld [vmem:[%s302 + $0x111] sm:$0xff]
        %v488 = vld [vmem:[%s302 + $0x121] sm:$0xff]
        %v489 = vld [vmem:[%s302 + $0x129] sm:$0xff]
        %v490 = vld [vmem:[%s302 + $0x139] sm:$0xff]
        %v491 = vld [vmem:[%s302 + $0x141] sm:$0xff]
        %v492 = vld [vmem:[%s302 + $0x151] sm:$0xff]
        %v493 = vld [vmem:[%s302 + $0x159] sm:$0xff]
        %v494 = vld [vmem:[%s302 + $0x169] sm:$0xff]
        %v495 = vld [vmem:[%s302 + $0x171] sm:$0xff]
        %v496 = vld [vmem:[%s302 + $0x2] sm:$0xff]
        %v497 = vld [vmem:[%s302 + $0xa] sm:$0xff]
        %v498 = vld [vmem:[%s302 + $0x1a] sm:$0xff]
        %v499 = vld [vmem:[%s302 + $0x22] sm:$0xff]
        %v500 = vld [vmem:[%s302 + $0x32] sm:$0xff]
        %v501 = vld [vmem:[%s302 + $0x3a] sm:$0xff]
        %v502 = vld [vmem:[%s302 + $0x4a] sm:$0xff]
        %v503 = vld [vmem:[%s302 + $0x52] sm:$0xff]
        %v504 = vld [vmem:[%s302 + $0x62] sm:$0xff]
        %v505 = vld [vmem:[%s302 + $0x6a] sm:$0xff]
        %v506 = vld [vmem:[%s302 + $0x7a] sm:$0xff]
        %v507 = vld [vmem:[%s302 + $0x82] sm:$0xff]
        %v508 = vld [vmem:[%s302 + $0x92] sm:$0xff]
        %v509 = vld [vmem:[%s302 + $0x9a] sm:$0xff]
        %v510 = vld [vmem:[%s302 + $0xaa] sm:$0xff]
        %v511 = vld [vmem:[%s302 + $0xb2] sm:$0xff]
        %v512 = vld [vmem:[%s302 + $0xc2] sm:$0xff]
        %v513 = vld [vmem:[%s302 + $0xca] sm:$0xff]
        %v514 = vld [vmem:[%s302 + $0xda] sm:$0xff]
        %v515 = vld [vmem:[%s302 + $0xe2] sm:$0xff]
        %v516 = vld [vmem:[%s302 + $0xf2] sm:$0xff]
        %v517 = vld [vmem:[%s302 + $0xfa] sm:$0xff]
        %v518 = vld [vmem:[%s302 + $0x10a] sm:$0xff]
        %v519 = vld [vmem:[%s302 + $0x112] sm:$0xff]
        %v520 = vld [vmem:[%s302 + $0x122] sm:$0xff]
        %v521 = vld [vmem:[%s302 + $0x12a] sm:$0xff]
        %v522 = vld [vmem:[%s302 + $0x13a] sm:$0xff]
        %v523 = vld [vmem:[%s302 + $0x142] sm:$0xff]
        %v524 = vld [vmem:[%s302 + $0x152] sm:$0xff]
        %v525 = vld [vmem:[%s302 + $0x15a] sm:$0xff]
        %v526 = vld [vmem:[%s302 + $0x16a] sm:$0xff]
        %v527 = vld [vmem:[%s302 + $0x172] sm:$0xff]
        %s528 = scalar_lea.vmem [#allocation2], 48
        %v529 = vld [vmem:[%s528] sm:$0xff]
        %v530 = vld [vmem:[%s528 + $0x8] sm:$0xff]
        %v531 = vld [vmem:[%s528 + $0x18] sm:$0xff]
        %v532 = vld [vmem:[%s528 + $0x20] sm:$0xff]
        %v533 = vld [vmem:[%s528 + $0x30] sm:$0xff]
        %v534 = vld [vmem:[%s528 + $0x38] sm:$0xff]
        %v535 = vld [vmem:[%s528 + $0x48] sm:$0xff]
        %v536 = vld [vmem:[%s528 + $0x50] sm:$0xff]
        %v537 = vld [vmem:[%s528 + $0x60] sm:$0xff]
        %v538 = vld [vmem:[%s528 + $0x68] sm:$0xff]
        %v539 = vld [vmem:[%s528 + $0x78] sm:$0xff]
        %v540 = vld [vmem:[%s528 + $0x80] sm:$0xff]
        %v541 = vld [vmem:[%s528 + $0x90] sm:$0xff]
        %v542 = vld [vmem:[%s528 + $0x98] sm:$0xff]
        %v543 = vld [vmem:[%s528 + $0xa8] sm:$0xff]
        %v544 = vld [vmem:[%s528 + $0xb0] sm:$0xff]
        %v545 = vld [vmem:[%s528 + $0xc0] sm:$0xff]
        %v546 = vld [vmem:[%s528 + $0xc8] sm:$0xff]
        %v547 = vld [vmem:[%s528 + $0xd8] sm:$0xff]
        %v548 = vld [vmem:[%s528 + $0xe0] sm:$0xff]
        %v549 = vld [vmem:[%s528 + $0xf0] sm:$0xff]
        %v550 = vld [vmem:[%s528 + $0xf8] sm:$0xff]
        %v551 = vld [vmem:[%s528 + $0x108] sm:$0xff]
        %v552 = vld [vmem:[%s528 + $0x110] sm:$0xff]
        %v553 = vld [vmem:[%s528 + $0x120] sm:$0xff]
        %v554 = vld [vmem:[%s528 + $0x128] sm:$0xff]
        %v555 = vld [vmem:[%s528 + $0x138] sm:$0xff]
        %v556 = vld [vmem:[%s528 + $0x140] sm:$0xff]
        %v557 = vld [vmem:[%s528 + $0x150] sm:$0xff]
        %v558 = vld [vmem:[%s528 + $0x158] sm:$0xff]
        %v559 = vld [vmem:[%s528 + $0x168] sm:$0xff]
        %v560 = vld [vmem:[%s528 + $0x170] sm:$0xff]
        %v561 = vld [vmem:[%s528 + $0x1] sm:$0xff]
        %v562 = vld [vmem:[%s528 + $0x9] sm:$0xff]
        %v563 = vld [vmem:[%s528 + $0x19] sm:$0xff]
        %v564 = vld [vmem:[%s528 + $0x21] sm:$0xff]
        %v565 = vld [vmem:[%s528 + $0x31] sm:$0xff]
        %v566 = vld [vmem:[%s528 + $0x39] sm:$0xff]
        %v567 = vld [vmem:[%s528 + $0x49] sm:$0xff]
        %v568 = vld [vmem:[%s528 + $0x51] sm:$0xff]
        %v569 = vld [vmem:[%s528 + $0x61] sm:$0xff]
        %v570 = vld [vmem:[%s528 + $0x69] sm:$0xff]
        %v571 = vld [vmem:[%s528 + $0x79] sm:$0xff]
        %v572 = vld [vmem:[%s528 + $0x81] sm:$0xff]
        %v573 = vld [vmem:[%s528 + $0x91] sm:$0xff]
        %v574 = vld [vmem:[%s528 + $0x99] sm:$0xff]
        %v575 = vld [vmem:[%s528 + $0xa9] sm:$0xff]
        %v576 = vld [vmem:[%s528 + $0xb1] sm:$0xff]
        %v577 = vld [vmem:[%s528 + $0xc1] sm:$0xff]
        %v578 = vld [vmem:[%s528 + $0xc9] sm:$0xff]
        %v579 = vld [vmem:[%s528 + $0xd9] sm:$0xff]
        %v580 = vld [vmem:[%s528 + $0xe1] sm:$0xff]
        %v581 = vld [vmem:[%s528 + $0xf1] sm:$0xff]
        %v582 = vld [vmem:[%s528 + $0xf9] sm:$0xff]
        %v583 = vld [vmem:[%s528 + $0x109] sm:$0xff]
        %v584 = vld [vmem:[%s528 + $0x111] sm:$0xff]
        %v585 = vld [vmem:[%s528 + $0x121] sm:$0xff]
        %v586 = vld [vmem:[%s528 + $0x129] sm:$0xff]
        %v587 = vld [vmem:[%s528 + $0x139] sm:$0xff]
        %v588 = vld [vmem:[%s528 + $0x141] sm:$0xff]
        %v589 = vld [vmem:[%s528 + $0x151] sm:$0xff]
        %v590 = vld [vmem:[%s528 + $0x159] sm:$0xff]
        %v591 = vld [vmem:[%s528 + $0x169] sm:$0xff]
        %v592 = vld [vmem:[%s528 + $0x171] sm:$0xff]
        %v593 = vld [vmem:[%s528 + $0x2] sm:$0xff]
        %v594 = vld [vmem:[%s528 + $0xa] sm:$0xff]
        %v595 = vld [vmem:[%s528 + $0x1a] sm:$0xff]
        %v596 = vld [vmem:[%s528 + $0x22] sm:$0xff]
        %v597 = vld [vmem:[%s528 + $0x32] sm:$0xff]
        %v598 = vld [vmem:[%s528 + $0x3a] sm:$0xff]
        %v599 = vld [vmem:[%s528 + $0x4a] sm:$0xff]
        %v600 = vld [vmem:[%s528 + $0x52] sm:$0xff]
        %v601 = vld [vmem:[%s528 + $0x62] sm:$0xff]
        %v602 = vld [vmem:[%s528 + $0x6a] sm:$0xff]
        %v603 = vld [vmem:[%s528 + $0x7a] sm:$0xff]
        %v604 = vld [vmem:[%s528 + $0x82] sm:$0xff]
        %v605 = vld [vmem:[%s528 + $0x92] sm:$0xff]
        %v606 = vld [vmem:[%s528 + $0x9a] sm:$0xff]
        %v607 = vld [vmem:[%s528 + $0xaa] sm:$0xff]
        %v608 = vld [vmem:[%s528 + $0xb2] sm:$0xff]
        %v609 = vld [vmem:[%s528 + $0xc2] sm:$0xff]
        %v610 = vld [vmem:[%s528 + $0xca] sm:$0xff]
        %v611 = vld [vmem:[%s528 + $0xda] sm:$0xff]
        %v612 = vld [vmem:[%s528 + $0xe2] sm:$0xff]
        %v613 = vld [vmem:[%s528 + $0xf2] sm:$0xff]
        %v614 = vld [vmem:[%s528 + $0xfa] sm:$0xff]
        %v615 = vld [vmem:[%s528 + $0x10a] sm:$0xff]
        %v616 = vld [vmem:[%s528 + $0x112] sm:$0xff]
        %v617 = vld [vmem:[%s528 + $0x122] sm:$0xff]
        %v618 = vld [vmem:[%s528 + $0x12a] sm:$0xff]
        %v619 = vld [vmem:[%s528 + $0x13a] sm:$0xff]
        %v620 = vld [vmem:[%s528 + $0x142] sm:$0xff]
        %v621 = vld [vmem:[%s528 + $0x152] sm:$0xff]
        %v622 = vld [vmem:[%s528 + $0x15a] sm:$0xff]
        %v623 = vld [vmem:[%s528 + $0x16a] sm:$0xff]
        %v624 = vld [vmem:[%s528 + $0x172] sm:$0xff]
        %v625 = vld [vmem:[#allocation6] sm:$0xff]
        %v626 = vld [vmem:[#allocation6 + $0x8] sm:$0xff]
        %v627 = vld [vmem:[#allocation6 + $0x10] sm:$0xff]
        %v628 = vld [vmem:[#allocation6 + $0x18] sm:$0xff]
        %v629 = vld [vmem:[#allocation6 + $0x20] sm:$0xff]
        %v630 = vld [vmem:[#allocation6 + $0x28] sm:$0xff]
        %v631 = vld [vmem:[#allocation6 + $0x30] sm:$0xff]
        %v632 = vld [vmem:[#allocation6 + $0x38] sm:$0xff]
        %v633 = vld [vmem:[#allocation6 + $0x40] sm:$0xff]
        %v634 = vld [vmem:[#allocation6 + $0x48] sm:$0xff]
        %v635 = vld [vmem:[#allocation6 + $0x50] sm:$0xff]
        %v636 = vld [vmem:[#allocation6 + $0x58] sm:$0xff]
        %v637 = vld [vmem:[#allocation6 + $0x60] sm:$0xff]
        %v638 = vld [vmem:[#allocation6 + $0x68] sm:$0xff]
        %v639 = vld [vmem:[#allocation6 + $0x70] sm:$0xff]
        %v640 = vld [vmem:[#allocation6 + $0x78] sm:$0xff]
        %v641 = vld [vmem:[#allocation6 + $0x80] sm:$0xff]
        %v642 = vld [vmem:[#allocation6 + $0x88] sm:$0xff]
        %v643 = vld [vmem:[#allocation6 + $0x90] sm:$0xff]
        %v644 = vld [vmem:[#allocation6 + $0x98] sm:$0xff]
        %v645 = vld [vmem:[#allocation6 + $0xa0] sm:$0xff]
        %v646 = vld [vmem:[#allocation6 + $0xa8] sm:$0xff]
        %v647 = vld [vmem:[#allocation6 + $0xb0] sm:$0xff]
        %v648 = vld [vmem:[#allocation6 + $0xb8] sm:$0xff]
        %v649 = vld [vmem:[#allocation6 + $0xc0] sm:$0xff]
        %v650 = vld [vmem:[#allocation6 + $0xc8] sm:$0xff]
        %v651 = vld [vmem:[#allocation6 + $0xd0] sm:$0xff]
        %v652 = vld [vmem:[#allocation6 + $0xd8] sm:$0xff]
        %v653 = vld [vmem:[#allocation6 + $0xe0] sm:$0xff]
        %v654 = vld [vmem:[#allocation6 + $0xe8] sm:$0xff]
        %v655 = vld [vmem:[#allocation6 + $0xf0] sm:$0xff]
        %v656 = vld [vmem:[#allocation6 + $0xf8] sm:$0xff]
        %v657 = vld [vmem:[#allocation6 + $0x100] sm:$0xff]
        %v658 = vld [vmem:[#allocation6 + $0x108] sm:$0xff]
        %v659 = vld [vmem:[#allocation6 + $0x110] sm:$0xff]
        %v660 = vld [vmem:[#allocation6 + $0x118] sm:$0xff]
        %v661 = vld [vmem:[#allocation6 + $0x120] sm:$0xff]
        %v662 = vld [vmem:[#allocation6 + $0x128] sm:$0xff]
        %v663 = vld [vmem:[#allocation6 + $0x130] sm:$0xff]
        %v664 = vld [vmem:[#allocation6 + $0x138] sm:$0xff]
        %v665 = vld [vmem:[#allocation6 + $0x140] sm:$0xff]
        %v666 = vld [vmem:[#allocation6 + $0x148] sm:$0xff]
        %v667 = vld [vmem:[#allocation6 + $0x150] sm:$0xff]
        %v668 = vld [vmem:[#allocation6 + $0x158] sm:$0xff]
        %v669 = vld [vmem:[#allocation6 + $0x160] sm:$0xff]
        %v670 = vld [vmem:[#allocation6 + $0x168] sm:$0xff]
        %v671 = vld [vmem:[#allocation6 + $0x170] sm:$0xff]
        %v672 = vld [vmem:[#allocation6 + $0x178] sm:$0xff]
        %v673 = vld [vmem:[#allocation6 + $0x180] sm:$0xff]
        %v674 = vld [vmem:[#allocation6 + $0x188] sm:$0xff]
        %v675 = vld [vmem:[#allocation6 + $0x190] sm:$0xff]
        %v676 = vld [vmem:[#allocation6 + $0x198] sm:$0xff]
        %v677 = vld [vmem:[#allocation6 + $0x1a0] sm:$0xff]
        %v678 = vld [vmem:[#allocation6 + $0x1a8] sm:$0xff]
        %v679 = vld [vmem:[#allocation6 + $0x1b0] sm:$0xff]
        %v680 = vld [vmem:[#allocation6 + $0x1b8] sm:$0xff]
        %v681 = vld [vmem:[#allocation6 + $0x1c0] sm:$0xff]
        %v682 = vld [vmem:[#allocation6 + $0x1c8] sm:$0xff]
        %v683 = vld [vmem:[#allocation6 + $0x1d0] sm:$0xff]
        %v684 = vld [vmem:[#allocation6 + $0x1d8] sm:$0xff]
        %v685 = vld [vmem:[#allocation6 + $0x1e0] sm:$0xff]
        %v686 = vld [vmem:[#allocation6 + $0x1e8] sm:$0xff]
        %v687 = vld [vmem:[#allocation6 + $0x1f0] sm:$0xff]
        %v688 = vld [vmem:[#allocation6 + $0x1f8] sm:$0xff]
        %v689 = vld [vmem:[#allocation6 + $0x200] sm:$0xff]
        %v690 = vld [vmem:[#allocation6 + $0x208] sm:$0xff]
        %v691 = vld [vmem:[#allocation6 + $0x210] sm:$0xff]
        %v692 = vld [vmem:[#allocation6 + $0x218] sm:$0xff]
        %v693 = vld [vmem:[#allocation6 + $0x220] sm:$0xff]
        %v694 = vld [vmem:[#allocation6 + $0x228] sm:$0xff]
        %v695 = vld [vmem:[#allocation6 + $0x230] sm:$0xff]
        %v696 = vld [vmem:[#allocation6 + $0x238] sm:$0xff]
        %v697 = vld [vmem:[#allocation6 + $0x240] sm:$0xff]
        %v698 = vld [vmem:[#allocation6 + $0x248] sm:$0xff]
        %v699 = vld [vmem:[#allocation6 + $0x250] sm:$0xff]
        %v700 = vld [vmem:[#allocation6 + $0x258] sm:$0xff]
        %v701 = vld [vmem:[#allocation6 + $0x260] sm:$0xff]
        %v702 = vld [vmem:[#allocation6 + $0x268] sm:$0xff]
        %v703 = vld [vmem:[#allocation6 + $0x270] sm:$0xff]
        %v704 = vld [vmem:[#allocation6 + $0x278] sm:$0xff]
        %v705 = vld [vmem:[#allocation6 + $0x280] sm:$0xff]
        %v706 = vld [vmem:[#allocation6 + $0x288] sm:$0xff]
        %v707 = vld [vmem:[#allocation6 + $0x290] sm:$0xff]
        %v708 = vld [vmem:[#allocation6 + $0x298] sm:$0xff]
        %v709 = vld [vmem:[#allocation6 + $0x2a0] sm:$0xff]
        %v710 = vld [vmem:[#allocation6 + $0x2a8] sm:$0xff]
        %v711 = vld [vmem:[#allocation6 + $0x2b0] sm:$0xff]
        %v712 = vld [vmem:[#allocation6 + $0x2b8] sm:$0xff]
        %v713 = vld [vmem:[#allocation6 + $0x2c0] sm:$0xff]
        %v714 = vld [vmem:[#allocation6 + $0x2c8] sm:$0xff]
        %v715 = vld [vmem:[#allocation6 + $0x2d0] sm:$0xff]
        %v716 = vld [vmem:[#allocation6 + $0x2d8] sm:$0xff]
        %v717 = vld [vmem:[#allocation6 + $0x2e0] sm:$0xff]
        %v718 = vld [vmem:[#allocation6 + $0x2e8] sm:$0xff]
        %v719 = vld [vmem:[#allocation6 + $0x2f0] sm:$0xff]
        %v720 = vld [vmem:[#allocation6 + $0x2f8] sm:$0xff]
        %v721 = vld [vmem:[#allocation6 + $0x300] sm:$0xff]
        %v722 = vld [vmem:[#allocation6 + $0x308] sm:$0xff]
        %v723 = vld [vmem:[#allocation6 + $0x310] sm:$0xff]
        %v724 = vld [vmem:[#allocation6 + $0x318] sm:$0xff]
        %v725 = vld [vmem:[#allocation6 + $0x320] sm:$0xff]
        %v726 = vld [vmem:[#allocation6 + $0x328] sm:$0xff]
        %v727 = vld [vmem:[#allocation6 + $0x330] sm:$0xff]
        %v728 = vld [vmem:[#allocation6 + $0x338] sm:$0xff]
        %v729 = vld [vmem:[#allocation6 + $0x340] sm:$0xff]
        %v730 = vld [vmem:[#allocation6 + $0x348] sm:$0xff]
        %v731 = vld [vmem:[#allocation6 + $0x350] sm:$0xff]
        %v732 = vld [vmem:[#allocation6 + $0x358] sm:$0xff]
        %v733 = vld [vmem:[#allocation6 + $0x360] sm:$0xff]
        %v734 = vld [vmem:[#allocation6 + $0x368] sm:$0xff]
        %v735 = vld [vmem:[#allocation6 + $0x370] sm:$0xff]
        %v736 = vld [vmem:[#allocation6 + $0x378] sm:$0xff]
        %v737 = vld [vmem:[#allocation6 + $0x380] sm:$0xff]
        %v738 = vld [vmem:[#allocation6 + $0x388] sm:$0xff]
        %v739 = vld [vmem:[#allocation6 + $0x390] sm:$0xff]
        %v740 = vld [vmem:[#allocation6 + $0x398] sm:$0xff]
        %v741 = vld [vmem:[#allocation6 + $0x3a0] sm:$0xff]
        %v742 = vld [vmem:[#allocation6 + $0x3a8] sm:$0xff]
        %v743 = vld [vmem:[#allocation6 + $0x3b0] sm:$0xff]
        %v744 = vld [vmem:[#allocation6 + $0x3b8] sm:$0xff]
        %v745 = vld [vmem:[#allocation6 + $0x3c0] sm:$0xff]
        %v746 = vld [vmem:[#allocation6 + $0x3c8] sm:$0xff]
        %v747 = vld [vmem:[#allocation6 + $0x3d0] sm:$0xff]
        %v748 = vld [vmem:[#allocation6 + $0x3d8] sm:$0xff]
        %v749 = vld [vmem:[#allocation6 + $0x3e0] sm:$0xff]
        %v750 = vld [vmem:[#allocation6 + $0x3e8] sm:$0xff]
        %v751 = vld [vmem:[#allocation6 + $0x3f0] sm:$0xff]
        %v752 = vld [vmem:[#allocation6 + $0x3f8] sm:$0xff]
        %v753 = vld [vmem:[#allocation6 + $0x400] sm:$0xff]
        %v754 = vld [vmem:[#allocation6 + $0x408] sm:$0xff]
        %v755 = vld [vmem:[#allocation6 + $0x410] sm:$0xff]
        %v756 = vld [vmem:[#allocation6 + $0x418] sm:$0xff]
        %v757 = vld [vmem:[#allocation6 + $0x420] sm:$0xff]
        %v758 = vld [vmem:[#allocation6 + $0x428] sm:$0xff]
        %v759 = vld [vmem:[#allocation6 + $0x430] sm:$0xff]
        %v760 = vld [vmem:[#allocation6 + $0x438] sm:$0xff]
        %v761 = vld [vmem:[#allocation6 + $0x440] sm:$0xff]
        %v762 = vld [vmem:[#allocation6 + $0x448] sm:$0xff]
        %v763 = vld [vmem:[#allocation6 + $0x450] sm:$0xff]
        %v764 = vld [vmem:[#allocation6 + $0x458] sm:$0xff]
        %v765 = vld [vmem:[#allocation6 + $0x460] sm:$0xff]
        %v766 = vld [vmem:[#allocation6 + $0x468] sm:$0xff]
        %v767 = vld [vmem:[#allocation6 + $0x470] sm:$0xff]
        %v768 = vld [vmem:[#allocation6 + $0x478] sm:$0xff]
        %v769 = vld [vmem:[#allocation8] sm:$0x1]
        %v771 = vlaneseq
        %v772 = vshrl.u32 %v771, 7
        %v773 = vsub.s32 0, %v772
        %v774 = vrot.slane %v769, %v773
        %776 = vmatprep.subr.mxu0 0.0
        %777 = vmatpush1.msra.mxu0 %v625
        %778 = vmatprep.subr.mxu0 0.0
        %779 = vmatpush1.msra.mxu0 %v626
        %780 = vmatprep.subr.mxu0 0.0
        %781 = vmatpush1.msra.mxu0 %v627
        %782 = vmatprep.subr.mxu0 0.0
        %783 = vmatpush1.msra.mxu0 %v628
        %784 = vmatprep.subr.mxu0 0.0
        %785 = vmatpush1.msra.mxu0 %v629
        %786 = vmatprep.subr.mxu0 0.0
        %787 = vmatpush1.msra.mxu0 %v630
        %788 = vmatprep.subr.mxu0 0.0
        %789 = vmatpush1.msra.mxu0 %v631
        %790 = vmatprep.subr.mxu0 0.0
        %791 = vmatpush1.msra.mxu0 %v632
        %792 = vmatprep.subr.mxu0 0.0
        %793 = vmatpush1.msra.mxu0 %v633
        %794 = vmatprep.subr.mxu0 0.0
        %795 = vmatpush1.msra.mxu0 %v634
        %796 = vmatprep.subr.mxu0 0.0
        %797 = vmatpush1.msra.mxu0 %v635
        %798 = vmatprep.subr.mxu0 0.0
        %799 = vmatpush1.msra.mxu0 %v636
        %800 = vmatprep.subr.mxu0 0.0
        %801 = vmatpush1.msra.mxu0 %v637
        %802 = vmatprep.subr.mxu0 0.0
        %803 = vmatpush1.msra.mxu0 %v638
        %804 = vmatprep.subr.mxu0 0.0
        %805 = vmatpush1.msra.mxu0 %v639
        %806 = vmatprep.subr.mxu0 0.0
        %807 = vmatpush1.msra.mxu0 %v640
        %808 = vmatprep.subr.mxu0 0.0
        %809 = vmatpush1.msra.mxu0 %v641
        %810 = vmatprep.subr.mxu0 0.0
        %811 = vmatpush1.msra.mxu0 %v642
        %812 = vmatprep.subr.mxu0 0.0
        %813 = vmatpush1.msra.mxu0 %v643
        %814 = vmatprep.subr.mxu0 0.0
        %815 = vmatpush1.msra.mxu0 %v644
        %816 = vmatprep.subr.mxu0 0.0
        %817 = vmatpush1.msra.mxu0 %v645
        %818 = vmatprep.subr.mxu0 0.0
        %819 = vmatpush1.msra.mxu0 %v646
        %820 = vmatprep.subr.mxu0 0.0
        %821 = vmatpush1.msra.mxu0 %v647
        %822 = vmatprep.subr.mxu0 0.0
        %823 = vmatpush1.msra.mxu0 %v648
        %824 = vmatprep.subr.mxu0 0.0
        %825 = vmatpush1.msra.mxu0 %v649
        %826 = vmatprep.subr.mxu0 0.0
        %827 = vmatpush1.msra.mxu0 %v650
        %828 = vmatprep.subr.mxu0 0.0
        %829 = vmatpush1.msra.mxu0 %v651
        %830 = vmatprep.subr.mxu0 0.0
        %831 = vmatpush1.msra.mxu0 %v652
        %832 = vmatprep.subr.mxu0 0.0
        %833 = vmatpush1.msra.mxu0 %v653
        %834 = vmatprep.subr.mxu0 0.0
        %835 = vmatpush1.msra.mxu0 %v654
        %836 = vmatprep.subr.mxu0 0.0
        %837 = vmatpush1.msra.mxu0 %v655
        %838 = vmatprep.subr.mxu0 0.0
        %839 = vmatpush1.msra.mxu0 %v656
        %840 = vmatprep.mubr.f32.mxu0 %v368
        %841 = vmatmul.mubr.f32.gmra.mrb[0].mxu0 %v336
        %v842 = vpop.f32.mrb[0].mxu0
        %v843 = vadd.f32 %v774, %v842
        %v844 = vpop.f32.mrb[0].mxu0
        %845 = vmatprep.mubr.f32.mxu0 %v369
        %846 = vmatmul.mubr.f32.gmra.mrb[0].mxu0 %v337
        %v847 = vpop.f32.mrb[0].mxu0
        %v848 = vadd.f32 %v774, %v847
        %v849 = vpop.f32.mrb[0].mxu0
        %850 = vmatprep.mubr.f32.mxu0 %v370
        %851 = vmatmul.mubr.f32.gmra.mrb[0].mxu0 %v338
        %v852 = vpop.f32.mrb[0].mxu0
        %v853 = vadd.f32 %v774, %v852
        %v854 = vpop.f32.mrb[0].mxu0
        %855 = vmatprep.mubr.f32.mxu0 %v371
        %856 = vmatmul.mubr.f32.gmra.mrb[0].mxu0 %v339
        %v857 = vpop.f32.mrb[0].mxu0
        %v858 = vadd.f32 %v774, %v857
        %v859 = vpop.f32.mrb[0].mxu0
        %860 = vmatprep.mubr.f32.mxu0 %v372
        %861 = vmatmul.mubr.f32.gmra.mrb[0].mxu0 %v340
        %v862 = vpop.f32.mrb[0].mxu0
        %v863 = vadd.f32 %v774, %v862
        %v864 = vpop.f32.mrb[0].mxu0
        %865 = vmatprep.mubr.f32.mxu0 %v373
        %866 = vmatmul.mubr.f32.gmra.mrb[0].mxu0 %v341
        %v867 = vpop.f32.mrb[0].mxu0
        %v868 = vadd.f32 %v774, %v867
        %v869 = vpop.f32.mrb[0].mxu0
        %870 = vmatprep.mubr.f32.mxu0 %v374
        %871 = vmatmul.mubr.f32.gmra.mrb[0].mxu0 %v342
        %v872 = vpop.f32.mrb[0].mxu0
        %v873 = vadd.f32 %v774, %v872
        %v874 = vpop.f32.mrb[0].mxu0
        %875 = vmatprep.mubr.f32.mxu0 %v375
        %876 = vmatmul.mubr.f32.gmra.mrb[0].mxu0 %v343
        %v877 = vpop.f32.mrb[0].mxu0
        %v878 = vadd.f32 %v774, %v877
        %v879 = vpop.f32.mrb[0].mxu0
        %880 = vmatprep.mubr.f32.mxu0 %v376
        %881 = vmatmul.mubr.f32.gmra.mrb[0].mxu0 %v344
        %v882 = vpop.f32.mrb[0].mxu0
        %v883 = vadd.f32 %v774, %v882
        %v884 = vpop.f32.mrb[0].mxu0
        %885 = vmatprep.mubr.f32.mxu0 %v377
        %886 = vmatmul.mubr.f32.gmra.mrb[0].mxu0 %v345
        %v887 = vpop.f32.mrb[0].mxu0
        %v888 = vadd.f32 %v774, %v887
        %v889 = vpop.f32.mrb[0].mxu0
        %890 = vmatprep.mubr.f32.mxu0 %v378
        %891 = vmatmul.mubr.f32.gmra.mrb[0].mxu0 %v346
        %v892 = vpop.f32.mrb[0].mxu0
        %v893 = vadd.f32 %v774, %v892
        %v894 = vpop.f32.mrb[0].mxu0
        %895 = vmatprep.mubr.f32.mxu0 %v379
        %896 = vmatmul.mubr.f32.gmra.mrb[0].mxu0 %v347
        %v897 = vpop.f32.mrb[0].mxu0
        %v898 = vadd.f32 %v774, %v897
        %v899 = vpop.f32.mrb[0].mxu0
        %900 = vmatprep.mubr.f32.mxu0 %v380
        %901 = vmatmul.mubr.f32.gmra.mrb[0].mxu0 %v348
        %v902 = vpop.f32.mrb[0].mxu0
        %v903 = vadd.f32 %v774, %v902
        %v904 = vpop.f32.mrb[0].mxu0
        %905 = vmatprep.mubr.f32.mxu0 %v381
        %906 = vmatmul.mubr.f32.gmra.mrb[0].mxu0 %v349
        %v907 = vpop.f32.mrb[0].mxu0
        %v908 = vadd.f32 %v774, %v907
        %v909 = vpop.f32.mrb[0].mxu0
        %910 = vmatprep.mubr.f32.mxu0 %v382
        %911 = vmatmul.mubr.f32.gmra.mrb[0].mxu0 %v350
        %v912 = vpop.f32.mrb[0].mxu0
        %v913 = vadd.f32 %v774, %v912
        %v914 = vpop.f32.mrb[0].mxu0
        %915 = vmatprep.mubr.f32.mxu0 %v383
        %916 = vmatmul.mubr.f32.gmra.mrb[0].mxu0 %v351
        %v917 = vpop.f32.mrb[0].mxu0
        %v918 = vadd.f32 %v774, %v917
        %v919 = vpop.f32.mrb[0].mxu0
        %920 = vmatprep.mubr.f32.mxu0 %v384
        %921 = vmatmul.mubr.f32.gmra.mrb[0].mxu0 %v352
        %v922 = vpop.f32.mrb[0].mxu0
        %v923 = vadd.f32 %v774, %v922
        %v924 = vpop.f32.mrb[0].mxu0
        %925 = vmatprep.mubr.f32.mxu0 %v385
        %926 = vmatmul.mubr.f32.gmra.mrb[0].mxu0 %v353
        %v927 = vpop.f32.mrb[0].mxu0
        %v928 = vadd.f32 %v774, %v927
        %v929 = vpop.f32.mrb[0].mxu0
        %930 = vmatprep.mubr.f32.mxu0 %v386
        %931 = vmatmul.mubr.f32.gmra.mrb[0].mxu0 %v354
        %v932 = vpop.f32.mrb[0].mxu0
        %v933 = vadd.f32 %v774, %v932
        %v934 = vpop.f32.mrb[0].mxu0
        %935 = vmatprep.mubr.f32.mxu0 %v387
        %936 = vmatmul.mubr.f32.gmra.mrb[0].mxu0 %v355
        %v937 = vpop.f32.mrb[0].mxu0
        %v938 = vadd.f32 %v774, %v937
        %v939 = vpop.f32.mrb[0].mxu0
        %940 = vmatprep.mubr.f32.mxu0 %v388
        %941 = vmatmul.mubr.f32.gmra.mrb[0].mxu0 %v356
        %v942 = vpop.f32.mrb[0].mxu0
        %v943 = vadd.f32 %v774, %v942
        %v944 = vpop.f32.mrb[0].mxu0
        %945 = vmatprep.mubr.f32.mxu0 %v389
        %946 = vmatmul.mubr.f32.gmra.mrb[0].mxu0 %v357
        %v947 = vpop.f32.mrb[0].mxu0
        %v948 = vadd.f32 %v774, %v947
        %v949 = vpop.f32.mrb[0].mxu0
        %950 = vmatprep.mubr.f32.mxu0 %v390
        %951 = vmatmul.mubr.f32.gmra.mrb[0].mxu0 %v358
        %v952 = vpop.f32.mrb[0].mxu0
        %v953 = vadd.f32 %v774, %v952
        %v954 = vpop.f32.mrb[0].mxu0
        %955 = vmatprep.mubr.f32.mxu0 %v391
        %956 = vmatmul.mubr.f32.gmra.mrb[0].mxu0 %v359
        %v957 = vpop.f32.mrb[0].mxu0
        %v958 = vadd.f32 %v774, %v957
        %v959 = vpop.f32.mrb[0].mxu0
        %960 = vmatprep.mubr.f32.mxu0 %v392
        %961 = vmatmul.mubr.f32.gmra.mrb[0].mxu0 %v360
        %v962 = vpop.f32.mrb[0].mxu0
        %v963 = vadd.f32 %v774, %v962
        %v964 = vpop.f32.mrb[0].mxu0
        %965 = vmatprep.mubr.f32.mxu0 %v393
        %966 = vmatmul.mubr.f32.gmra.mrb[0].mxu0 %v361
        %v967 = vpop.f32.mrb[0].mxu0
        %v968 = vadd.f32 %v774, %v967
        %v969 = vpop.f32.mrb[0].mxu0
        %970 = vmatprep.mubr.f32.mxu0 %v394
        %971 = vmatmul.mubr.f32.gmra.mrb[0].mxu0 %v362
        %v972 = vpop.f32.mrb[0].mxu0
        %v973 = vadd.f32 %v774, %v972
        %v974 = vpop.f32.mrb[0].mxu0
        %975 = vmatprep.mubr.f32.mxu0 %v395
        %976 = vmatmul.mubr.f32.gmra.mrb[0].mxu0 %v363
        %v977 = vpop.f32.mrb[0].mxu0
        %v978 = vadd.f32 %v774, %v977
        %v979 = vpop.f32.mrb[0].mxu0
        %980 = vmatprep.mubr.f32.mxu0 %v396
        %981 = vmatmul.mubr.f32.gmra.mrb[0].mxu0 %v364
        %v982 = vpop.f32.mrb[0].mxu0
        %v983 = vadd.f32 %v774, %v982
        %v984 = vpop.f32.mrb[0].mxu0
        %985 = vmatprep.mubr.f32.mxu0 %v397
        %986 = vmatmul.mubr.f32.gmra.mrb[0].mxu0 %v365
        %v987 = vpop.f32.mrb[0].mxu0
        %v988 = vadd.f32 %v774, %v987
        %v989 = vpop.f32.mrb[0].mxu0
        %990 = vmatprep.mubr.f32.mxu0 %v398
        %991 = vmatmul.mubr.f32.gmra.mrb[0].mxu0 %v366
        %v992 = vpop.f32.mrb[0].mxu0
        %v993 = vadd.f32 %v774, %v992
        %v994 = vpop.f32.mrb[0].mxu0
        %995 = vmatprep.mubr.f32.mxu0 %v399
        %996 = vmatmul.mubr.f32.gmra.mrb[0].mxu0 %v367
        %v997 = vpop.f32.mrb[0].mxu0
        %v998 = vadd.f32 %v774, %v997
        %v999 = vpop.f32.mrb[0].mxu0
        %1000 = vdwg.mxu0
        %1001 = vmatprep.subr.mxu0 0.0
        %1002 = vmatpush1.msra.mxu0 %v657
        %1003 = vmatprep.subr.mxu0 0.0
        %1004 = vmatpush1.msra.mxu0 %v658
        %1005 = vmatprep.subr.mxu0 0.0
        %1006 = vmatpush1.msra.mxu0 %v659
        %1007 = vmatprep.subr.mxu0 0.0
        %1008 = vmatpush1.msra.mxu0 %v660
        %1009 = vmatprep.subr.mxu0 0.0
        %1010 = vmatpush1.msra.mxu0 %v661
        %1011 = vmatprep.subr.mxu0 0.0
        %1012 = vmatpush1.msra.mxu0 %v662
        %1013 = vmatprep.subr.mxu0 0.0
        %1014 = vmatpush1.msra.mxu0 %v663
        %1015 = vmatprep.subr.mxu0 0.0
        %1016 = vmatpush1.msra.mxu0 %v664
        %1017 = vmatprep.subr.mxu0 0.0
        %1018 = vmatpush1.msra.mxu0 %v665
        %1019 = vmatprep.subr.mxu0 0.0
        %1020 = vmatpush1.msra.mxu0 %v666
        %1021 = vmatprep.subr.mxu0 0.0
        %1022 = vmatpush1.msra.mxu0 %v667
        %1023 = vmatprep.subr.mxu0 0.0
        %1024 = vmatpush1.msra.mxu0 %v668
        %1025 = vmatprep.subr.mxu0 0.0
        %1026 = vmatpush1.msra.mxu0 %v669
        %1027 = vmatprep.subr.mxu0 0.0
        %1028 = vmatpush1.msra.mxu0 %v670
        %1029 = vmatprep.subr.mxu0 0.0
        %1030 = vmatpush1.msra.mxu0 %v671
        %1031 = vmatprep.subr.mxu0 0.0
        %1032 = vmatpush1.msra.mxu0 %v672
        %1033 = vmatprep.subr.mxu0 0.0
        %1034 = vmatpush1.msra.mxu0 %v673
        %1035 = vmatprep.subr.mxu0 0.0
        %1036 = vmatpush1.msra.mxu0 %v674
        %1037 = vmatprep.subr.mxu0 0.0
        %1038 = vmatpush1.msra.mxu0 %v675
        %1039 = vmatprep.subr.mxu0 0.0
        %1040 = vmatpush1.msra.mxu0 %v676
        %1041 = vmatprep.subr.mxu0 0.0
        %1042 = vmatpush1.msra.mxu0 %v677
        %1043 = vmatprep.subr.mxu0 0.0
        %1044 = vmatpush1.msra.mxu0 %v678
        %1045 = vmatprep.subr.mxu0 0.0
        %1046 = vmatpush1.msra.mxu0 %v679
        %1047 = vmatprep.subr.mxu0 0.0
        %1048 = vmatpush1.msra.mxu0 %v680
        %1049 = vmatprep.subr.mxu0 0.0
        %1050 = vmatpush1.msra.mxu0 %v681
        %1051 = vmatprep.subr.mxu0 0.0
        %1052 = vmatpush1.msra.mxu0 %v682
        %1053 = vmatprep.subr.mxu0 0.0
        %1054 = vmatpush1.msra.mxu0 %v683
        %1055 = vmatprep.subr.mxu0 0.0
        %1056 = vmatpush1.msra.mxu0 %v684
        %1057 = vmatprep.subr.mxu0 0.0
        %1058 = vmatpush1.msra.mxu0 %v685
        %1059 = vmatprep.subr.mxu0 0.0
        %1060 = vmatpush1.msra.mxu0 %v686
        %1061 = vmatprep.subr.mxu0 0.0
        %1062 = vmatpush1.msra.mxu0 %v687
        %1063 = vmatprep.subr.mxu0 0.0
        %1064 = vmatpush1.msra.mxu0 %v688
        %1065 = vmatprep.mubr.f32.mxu0 %v432
        %1066 = vmatmul.mubr.f32.gmra.mrb[0].mxu0 %v400
        %v1067 = vpop.f32.mrb[0].mxu0
        %v1068 = vadd.f32 %v843, %v1067
        %v1069 = vpop.f32.mrb[0].mxu0
        %1070 = vmatprep.mubr.f32.mxu0 %v433
        %1071 = vmatmul.mubr.f32.gmra.mrb[0].mxu0 %v401
        %v1072 = vpop.f32.mrb[0].mxu0
        %v1073 = vadd.f32 %v848, %v1072
        %v1074 = vpop.f32.mrb[0].mxu0
        %1075 = vmatprep.mubr.f32.mxu0 %v434
        %1076 = vmatmul.mubr.f32.gmra.mrb[0].mxu0 %v402
        %v1077 = vpop.f32.mrb[0].mxu0
        %v1078 = vadd.f32 %v853, %v1077
        %v1079 = vpop.f32.mrb[0].mxu0
        %1080 = vmatprep.mubr.f32.mxu0 %v435
        %1081 = vmatmul.mubr.f32.gmra.mrb[0].mxu0 %v403
        %v1082 = vpop.f32.mrb[0].mxu0
        %v1083 = vadd.f32 %v858, %v1082
        %v1084 = vpop.f32.mrb[0].mxu0
        %1085 = vmatprep.mubr.f32.mxu0 %v436
        %1086 = vmatmul.mubr.f32.gmra.mrb[0].mxu0 %v404
        %v1087 = vpop.f32.mrb[0].mxu0
        %v1088 = vadd.f32 %v863, %v1087
        %v1089 = vpop.f32.mrb[0].mxu0
        %1090 = vmatprep.mubr.f32.mxu0 %v437
        %1091 = vmatmul.mubr.f32.gmra.mrb[0].mxu0 %v405
        %v1092 = vpop.f32.mrb[0].mxu0
        %v1093 = vadd.f32 %v868, %v1092
        %v1094 = vpop.f32.mrb[0].mxu0
        %1095 = vmatprep.mubr.f32.mxu0 %v438
        %1096 = vmatmul.mubr.f32.gmra.mrb[0].mxu0 %v406
        %v1097 = vpop.f32.mrb[0].mxu0
        %v1098 = vadd.f32 %v873, %v1097
        %v1099 = vpop.f32.mrb[0].mxu0
        %1100 = vmatprep.mubr.f32.mxu0 %v439
        %1101 = vmatmul.mubr.f32.gmra.mrb[0].mxu0 %v407
        %v1102 = vpop.f32.mrb[0].mxu0
        %v1103 = vadd.f32 %v878, %v1102
        %v1104 = vpop.f32.mrb[0].mxu0
        %1105 = vmatprep.mubr.f32.mxu0 %v440
        %1106 = vmatmul.mubr.f32.gmra.mrb[0].mxu0 %v408
        %v1107 = vpop.f32.mrb[0].mxu0
        %v1108 = vadd.f32 %v883, %v1107
        %v1109 = vpop.f32.mrb[0].mxu0
        %1110 = vmatprep.mubr.f32.mxu0 %v441
        %1111 = vmatmul.mubr.f32.gmra.mrb[0].mxu0 %v409
        %v1112 = vpop.f32.mrb[0].mxu0
        %v1113 = vadd.f32 %v888, %v1112
        %v1114 = vpop.f32.mrb[0].mxu0
        %1115 = vmatprep.mubr.f32.mxu0 %v442
        %1116 = vmatmul.mubr.f32.gmra.mrb[0].mxu0 %v410
        %v1117 = vpop.f32.mrb[0].mxu0
        %v1118 = vadd.f32 %v893, %v1117
        %v1119 = vpop.f32.mrb[0].mxu0
        %1120 = vmatprep.mubr.f32.mxu0 %v443
        %1121 = vmatmul.mubr.f32.gmra.mrb[0].mxu0 %v411
        %v1122 = vpop.f32.mrb[0].mxu0
        %v1123 = vadd.f32 %v898, %v1122
        %v1124 = vpop.f32.mrb[0].mxu0
        %1125 = vmatprep.mubr.f32.mxu0 %v444
        %1126 = vmatmul.mubr.f32.gmra.mrb[0].mxu0 %v412
        %v1127 = vpop.f32.mrb[0].mxu0
        %v1128 = vadd.f32 %v903, %v1127
        %v1129 = vpop.f32.mrb[0].mxu0
        %1130 = vmatprep.mubr.f32.mxu0 %v445
        %1131 = vmatmul.mubr.f32.gmra.mrb[0].mxu0 %v413
        %v1132 = vpop.f32.mrb[0].mxu0
        %v1133 = vadd.f32 %v908, %v1132
        %v1134 = vpop.f32.mrb[0].mxu0
        %1135 = vmatprep.mubr.f32.mxu0 %v446
        %1136 = vmatmul.mubr.f32.gmra.mrb[0].mxu0 %v414
        %v1137 = vpop.f32.mrb[0].mxu0
        %v1138 = vadd.f32 %v913, %v1137
        %v1139 = vpop.f32.mrb[0].mxu0
        %1140 = vmatprep.mubr.f32.mxu0 %v447
        %1141 = vmatmul.mubr.f32.gmra.mrb[0].mxu0 %v415
        %v1142 = vpop.f32.mrb[0].mxu0
        %v1143 = vadd.f32 %v918, %v1142
        %v1144 = vpop.f32.mrb[0].mxu0
        %1145 = vmatprep.mubr.f32.mxu0 %v448
        %1146 = vmatmul.mubr.f32.gmra.mrb[0].mxu0 %v416
        %v1147 = vpop.f32.mrb[0].mxu0
        %v1148 = vadd.f32 %v923, %v1147
        %v1149 = vpop.f32.mrb[0].mxu0
        %1150 = vmatprep.mubr.f32.mxu0 %v449
        %1151 = vmatmul.mubr.f32.gmra.mrb[0].mxu0 %v417
        %v1152 = vpop.f32.mrb[0].mxu0
        %v1153 = vadd.f32 %v928, %v1152
        %v1154 = vpop.f32.mrb[0].mxu0
        %1155 = vmatprep.mubr.f32.mxu0 %v450
        %1156 = vmatmul.mubr.f32.gmra.mrb[0].mxu0 %v418
        %v1157 = vpop.f32.mrb[0].mxu0
        %v1158 = vadd.f32 %v933, %v1157
        %v1159 = vpop.f32.mrb[0].mxu0
        %1160 = vmatprep.mubr.f32.mxu0 %v451
        %1161 = vmatmul.mubr.f32.gmra.mrb[0].mxu0 %v419
        %v1162 = vpop.f32.mrb[0].mxu0
        %v1163 = vadd.f32 %v938, %v1162
        %v1164 = vpop.f32.mrb[0].mxu0
        %1165 = vmatprep.mubr.f32.mxu0 %v452
        %1166 = vmatmul.mubr.f32.gmra.mrb[0].mxu0 %v420
        %v1167 = vpop.f32.mrb[0].mxu0
        %v1168 = vadd.f32 %v943, %v1167
        %v1169 = vpop.f32.mrb[0].mxu0
        %1170 = vmatprep.mubr.f32.mxu0 %v453
        %1171 = vmatmul.mubr.f32.gmra.mrb[0].mxu0 %v421
        %v1172 = vpop.f32.mrb[0].mxu0
        %v1173 = vadd.f32 %v948, %v1172
        %v1174 = vpop.f32.mrb[0].mxu0
        %1175 = vmatprep.mubr.f32.mxu0 %v454
        %1176 = vmatmul.mubr.f32.gmra.mrb[0].mxu0 %v422
        %v1177 = vpop.f32.mrb[0].mxu0
        %v1178 = vadd.f32 %v953, %v1177
        %v1179 = vpop.f32.mrb[0].mxu0
        %1180 = vmatprep.mubr.f32.mxu0 %v455
        %1181 = vmatmul.mubr.f32.gmra.mrb[0].mxu0 %v423
        %v1182 = vpop.f32.mrb[0].mxu0
        %v1183 = vadd.f32 %v958, %v1182
        %v1184 = vpop.f32.mrb[0].mxu0
        %1185 = vmatprep.mubr.f32.mxu0 %v456
        %1186 = vmatmul.mubr.f32.gmra.mrb[0].mxu0 %v424
        %v1187 = vpop.f32.mrb[0].mxu0
        %v1188 = vadd.f32 %v963, %v1187
        %v1189 = vpop.f32.mrb[0].mxu0
        %1190 = vmatprep.mubr.f32.mxu0 %v457
        %1191 = vmatmul.mubr.f32.gmra.mrb[0].mxu0 %v425
        %v1192 = vpop.f32.mrb[0].mxu0
        %v1193 = vadd.f32 %v968, %v1192
        %v1194 = vpop.f32.mrb[0].mxu0
        %1195 = vmatprep.mubr.f32.mxu0 %v458
        %1196 = vmatmul.mubr.f32.gmra.mrb[0].mxu0 %v426
        %v1197 = vpop.f32.mrb[0].mxu0
        %v1198 = vadd.f32 %v973, %v1197
        %v1199 = vpop.f32.mrb[0].mxu0
        %1200 = vmatprep.mubr.f32.mxu0 %v459
        %1201 = vmatmul.mubr.f32.gmra.mrb[0].mxu0 %v427
        %v1202 = vpop.f32.mrb[0].mxu0
        %v1203 = vadd.f32 %v978, %v1202
        %v1204 = vpop.f32.mrb[0].mxu0
        %1205 = vmatprep.mubr.f32.mxu0 %v460
        %1206 = vmatmul.mubr.f32.gmra.mrb[0].mxu0 %v428
        %v1207 = vpop.f32.mrb[0].mxu0
        %v1208 = vadd.f32 %v983, %v1207
        %v1209 = vpop.f32.mrb[0].mxu0
        %1210 = vmatprep.mubr.f32.mxu0 %v461
        %1211 = vmatmul.mubr.f32.gmra.mrb[0].mxu0 %v429
        %v1212 = vpop.f32.mrb[0].mxu0
        %v1213 = vadd.f32 %v988, %v1212
        %v1214 = vpop.f32.mrb[0].mxu0
        %1215 = vmatprep.mubr.f32.mxu0 %v462
        %1216 = vmatmul.mubr.f32.gmra.mrb[0].mxu0 %v430
        %v1217 = vpop.f32.mrb[0].mxu0
        %v1218 = vadd.f32 %v993, %v1217
        %v1219 = vpop.f32.mrb[0].mxu0
        %1220 = vmatprep.mubr.f32.mxu0 %v463
        %1221 = vmatmul.mubr.f32.gmra.mrb[0].mxu0 %v431
        %v1222 = vpop.f32.mrb[0].mxu0
        %v1223 = vadd.f32 %v998, %v1222
        %v1224 = vpop.f32.mrb[0].mxu0
        %1225 = vdwg.mxu0
        %1226 = vmatprep.subr.mxu0 0.0
        %1227 = vmatpush1.msra.mxu0 %v689
        %1228 = vmatprep.subr.mxu0 0.0
        %1229 = vmatpush1.msra.mxu0 %v690
        %1230 = vmatprep.subr.mxu0 0.0
        %1231 = vmatpush1.msra.mxu0 %v691
        %1232 = vmatprep.subr.mxu0 0.0
        %1233 = vmatpush1.msra.mxu0 %v692
        %1234 = vmatprep.subr.mxu0 0.0
        %1235 = vmatpush1.msra.mxu0 %v693
        %1236 = vmatprep.subr.mxu0 0.0
        %1237 = vmatpush1.msra.mxu0 %v694
        %1238 = vmatprep.subr.mxu0 0.0
        %1239 = vmatpush1.msra.mxu0 %v695
        %1240 = vmatprep.subr.mxu0 0.0
        %1241 = vmatpush1.msra.mxu0 %v696
        %1242 = vmatprep.subr.mxu0 0.0
        %1243 = vmatpush1.msra.mxu0 %v697
        %1244 = vmatprep.subr.mxu0 0.0
        %1245 = vmatpush1.msra.mxu0 %v698
        %1246 = vmatprep.subr.mxu0 0.0
        %1247 = vmatpush1.msra.mxu0 %v699
        %1248 = vmatprep.subr.mxu0 0.0
        %1249 = vmatpush1.msra.mxu0 %v700
        %1250 = vmatprep.subr.mxu0 0.0
        %1251 = vmatpush1.msra.mxu0 %v701
        %1252 = vmatprep.subr.mxu0 0.0
        %1253 = vmatpush1.msra.mxu0 %v702
        %1254 = vmatprep.subr.mxu0 0.0
        %1255 = vmatpush1.msra.mxu0 %v703
        %1256 = vmatprep.subr.mxu0 0.0
        %1257 = vmatpush1.msra.mxu0 %v704
        %1258 = vmatprep.subr.mxu0 0.0
        %1259 = vmatpush1.msra.mxu0 %v705
        %1260 = vmatprep.subr.mxu0 0.0
        %1261 = vmatpush1.msra.mxu0 %v706
        %1262 = vmatprep.subr.mxu0 0.0
        %1263 = vmatpush1.msra.mxu0 %v707
        %1264 = vmatprep.subr.mxu0 0.0
        %1265 = vmatpush1.msra.mxu0 %v708
        %1266 = vmatprep.subr.mxu0 0.0
        %1267 = vmatpush1.msra.mxu0 %v709
        %1268 = vmatprep.subr.mxu0 0.0
        %1269 = vmatpush1.msra.mxu0 %v710
        %1270 = vmatprep.subr.mxu0 0.0
        %1271 = vmatpush1.msra.mxu0 %v711
        %1272 = vmatprep.subr.mxu0 0.0
        %1273 = vmatpush1.msra.mxu0 %v712
        %1274 = vmatprep.subr.mxu0 0.0
        %1275 = vmatpush1.msra.mxu0 %v713
        %1276 = vmatprep.subr.mxu0 0.0
        %1277 = vmatpush1.msra.mxu0 %v714
        %1278 = vmatprep.subr.mxu0 0.0
        %1279 = vmatpush1.msra.mxu0 %v715
        %1280 = vmatprep.subr.mxu0 0.0
        %1281 = vmatpush1.msra.mxu0 %v716
        %1282 = vmatprep.subr.mxu0 0.0
        %1283 = vmatpush1.msra.mxu0 %v717
        %1284 = vmatprep.subr.mxu0 0.0
        %1285 = vmatpush1.msra.mxu0 %v718
        %1286 = vmatprep.subr.mxu0 0.0
        %1287 = vmatpush1.msra.mxu0 %v719
        %1288 = vmatprep.subr.mxu0 0.0
        %1289 = vmatpush1.msra.mxu0 %v720
        %1290 = vmatprep.mubr.f32.mxu0 %v496
        %1291 = vmatmul.mubr.f32.gmra.mrb[0].mxu0 %v464
        %v1292 = vpop.f32.mrb[0].mxu0
        %v1293 = vadd.f32 %v1068, %v1292
        %v1294 = vpop.f32.mrb[0].mxu0
        %1295 = vmatprep.mubr.f32.mxu0 %v497
        %1296 = vmatmul.mubr.f32.gmra.mrb[0].mxu0 %v465
        %v1297 = vpop.f32.mrb[0].mxu0
        %v1298 = vadd.f32 %v1073, %v1297
        %v1299 = vpop.f32.mrb[0].mxu0
        %1300 = vmatprep.mubr.f32.mxu0 %v498
        %1301 = vmatmul.mubr.f32.gmra.mrb[0].mxu0 %v466
        %v1302 = vpop.f32.mrb[0].mxu0
        %v1303 = vadd.f32 %v1078, %v1302
        %v1304 = vpop.f32.mrb[0].mxu0
        %1305 = vmatprep.mubr.f32.mxu0 %v499
        %1306 = vmatmul.mubr.f32.gmra.mrb[0].mxu0 %v467
        %v1307 = vpop.f32.mrb[0].mxu0
        %v1308 = vadd.f32 %v1083, %v1307
        %v1309 = vpop.f32.mrb[0].mxu0
        %1310 = vmatprep.mubr.f32.mxu0 %v500
        %1311 = vmatmul.mubr.f32.gmra.mrb[0].mxu0 %v468
        %v1312 = vpop.f32.mrb[0].mxu0
        %v1313 = vadd.f32 %v1088, %v1312
        %v1314 = vpop.f32.mrb[0].mxu0
        %1315 = vmatprep.mubr.f32.mxu0 %v501
        %1316 = vmatmul.mubr.f32.gmra.mrb[0].mxu0 %v469
        %v1317 = vpop.f32.mrb[0].mxu0
        %v1318 = vadd.f32 %v1093, %v1317
        %v1319 = vpop.f32.mrb[0].mxu0
        %1320 = vmatprep.mubr.f32.mxu0 %v502
        %1321 = vmatmul.mubr.f32.gmra.mrb[0].mxu0 %v470
        %v1322 = vpop.f32.mrb[0].mxu0
        %v1323 = vadd.f32 %v1098, %v1322
        %v1324 = vpop.f32.mrb[0].mxu0
        %1325 = vmatprep.mubr.f32.mxu0 %v503
        %1326 = vmatmul.mubr.f32.gmra.mrb[0].mxu0 %v471
        %v1327 = vpop.f32.mrb[0].mxu0
        %v1328 = vadd.f32 %v1103, %v1327
        %v1329 = vpop.f32.mrb[0].mxu0
        %1330 = vmatprep.mubr.f32.mxu0 %v504
        %1331 = vmatmul.mubr.f32.gmra.mrb[0].mxu0 %v472
        %v1332 = vpop.f32.mrb[0].mxu0
        %v1333 = vadd.f32 %v1108, %v1332
        %v1334 = vpop.f32.mrb[0].mxu0
        %1335 = vmatprep.mubr.f32.mxu0 %v505
        %1336 = vmatmul.mubr.f32.gmra.mrb[0].mxu0 %v473
        %v1337 = vpop.f32.mrb[0].mxu0
        %v1338 = vadd.f32 %v1113, %v1337
        %v1339 = vpop.f32.mrb[0].mxu0
        %1340 = vmatprep.mubr.f32.mxu0 %v506
        %1341 = vmatmul.mubr.f32.gmra.mrb[0].mxu0 %v474
        %v1342 = vpop.f32.mrb[0].mxu0
        %v1343 = vadd.f32 %v1118, %v1342
        %v1344 = vpop.f32.mrb[0].mxu0
        %1345 = vmatprep.mubr.f32.mxu0 %v507
        %1346 = vmatmul.mubr.f32.gmra.mrb[0].mxu0 %v475
        %v1347 = vpop.f32.mrb[0].mxu0
        %v1348 = vadd.f32 %v1123, %v1347
        %v1349 = vpop.f32.mrb[0].mxu0
        %1350 = vmatprep.mubr.f32.mxu0 %v508
        %1351 = vmatmul.mubr.f32.gmra.mrb[0].mxu0 %v476
        %v1352 = vpop.f32.mrb[0].mxu0
        %v1353 = vadd.f32 %v1128, %v1352
        %v1354 = vpop.f32.mrb[0].mxu0
        %1355 = vmatprep.mubr.f32.mxu0 %v509
        %1356 = vmatmul.mubr.f32.gmra.mrb[0].mxu0 %v477
        %v1357 = vpop.f32.mrb[0].mxu0
        %v1358 = vadd.f32 %v1133, %v1357
        %v1359 = vpop.f32.mrb[0].mxu0
        %1360 = vmatprep.mubr.f32.mxu0 %v510
        %1361 = vmatmul.mubr.f32.gmra.mrb[0].mxu0 %v478
        %v1362 = vpop.f32.mrb[0].mxu0
        %v1363 = vadd.f32 %v1138, %v1362
        %v1364 = vpop.f32.mrb[0].mxu0
        %1365 = vmatprep.mubr.f32.mxu0 %v511
        %1366 = vmatmul.mubr.f32.gmra.mrb[0].mxu0 %v479
        %v1367 = vpop.f32.mrb[0].mxu0
        %v1368 = vadd.f32 %v1143, %v1367
        %v1369 = vpop.f32.mrb[0].mxu0
        %1370 = vmatprep.mubr.f32.mxu0 %v512
        %1371 = vmatmul.mubr.f32.gmra.mrb[0].mxu0 %v480
        %v1372 = vpop.f32.mrb[0].mxu0
        %v1373 = vadd.f32 %v1148, %v1372
        %v1374 = vpop.f32.mrb[0].mxu0
        %1375 = vmatprep.mubr.f32.mxu0 %v513
        %1376 = vmatmul.mubr.f32.gmra.mrb[0].mxu0 %v481
        %v1377 = vpop.f32.mrb[0].mxu0
        %v1378 = vadd.f32 %v1153, %v1377
        %v1379 = vpop.f32.mrb[0].mxu0
        %1380 = vmatprep.mubr.f32.mxu0 %v514
        %1381 = vmatmul.mubr.f32.gmra.mrb[0].mxu0 %v482
        %v1382 = vpop.f32.mrb[0].mxu0
        %v1383 = vadd.f32 %v1158, %v1382
        %v1384 = vpop.f32.mrb[0].mxu0
        %1385 = vmatprep.mubr.f32.mxu0 %v515
        %1386 = vmatmul.mubr.f32.gmra.mrb[0].mxu0 %v483
        %v1387 = vpop.f32.mrb[0].mxu0
        %v1388 = vadd.f32 %v1163, %v1387
        %v1389 = vpop.f32.mrb[0].mxu0
        %1390 = vmatprep.mubr.f32.mxu0 %v516
        %1391 = vmatmul.mubr.f32.gmra.mrb[0].mxu0 %v484
        %v1392 = vpop.f32.mrb[0].mxu0
        %v1393 = vadd.f32 %v1168, %v1392
        %v1394 = vpop.f32.mrb[0].mxu0
        %1395 = vmatprep.mubr.f32.mxu0 %v517
        %1396 = vmatmul.mubr.f32.gmra.mrb[0].mxu0 %v485
        %v1397 = vpop.f32.mrb[0].mxu0
        %v1398 = vadd.f32 %v1173, %v1397
        %v1399 = vpop.f32.mrb[0].mxu0
        %1400 = vmatprep.mubr.f32.mxu0 %v518
        %1401 = vmatmul.mubr.f32.gmra.mrb[0].mxu0 %v486
        %v1402 = vpop.f32.mrb[0].mxu0
        %v1403 = vadd.f32 %v1178, %v1402
        %v1404 = vpop.f32.mrb[0].mxu0
        %1405 = vmatprep.mubr.f32.mxu0 %v519
        %1406 = vmatmul.mubr.f32.gmra.mrb[0].mxu0 %v487
        %v1407 = vpop.f32.mrb[0].mxu0
        %v1408 = vadd.f32 %v1183, %v1407
        %v1409 = vpop.f32.mrb[0].mxu0
        %1410 = vmatprep.mubr.f32.mxu0 %v520
        %1411 = vmatmul.mubr.f32.gmra.mrb[0].mxu0 %v488
        %v1412 = vpop.f32.mrb[0].mxu0
        %v1413 = vadd.f32 %v1188, %v1412
        %v1414 = vpop.f32.mrb[0].mxu0
        %1415 = vmatprep.mubr.f32.mxu0 %v521
        %1416 = vmatmul.mubr.f32.gmra.mrb[0].mxu0 %v489
        %v1417 = vpop.f32.mrb[0].mxu0
        %v1418 = vadd.f32 %v1193, %v1417
        %v1419 = vpop.f32.mrb[0].mxu0
        %1420 = vmatprep.mubr.f32.mxu0 %v522
        %1421 = vmatmul.mubr.f32.gmra.mrb[0].mxu0 %v490
        %v1422 = vpop.f32.mrb[0].mxu0
        %v1423 = vadd.f32 %v1198, %v1422
        %v1424 = vpop.f32.mrb[0].mxu0
        %1425 = vmatprep.mubr.f32.mxu0 %v523
        %1426 = vmatmul.mubr.f32.gmra.mrb[0].mxu0 %v491
        %v1427 = vpop.f32.mrb[0].mxu0
        %v1428 = vadd.f32 %v1203, %v1427
        %v1429 = vpop.f32.mrb[0].mxu0
        %1430 = vmatprep.mubr.f32.mxu0 %v524
        %1431 = vmatmul.mubr.f32.gmra.mrb[0].mxu0 %v492
        %v1432 = vpop.f32.mrb[0].mxu0
        %v1433 = vadd.f32 %v1208, %v1432
        %v1434 = vpop.f32.mrb[0].mxu0
        %1435 = vmatprep.mubr.f32.mxu0 %v525
        %1436 = vmatmul.mubr.f32.gmra.mrb[0].mxu0 %v493
        %v1437 = vpop.f32.mrb[0].mxu0
        %v1438 = vadd.f32 %v1213, %v1437
        %v1439 = vpop.f32.mrb[0].mxu0
        %1440 = vmatprep.mubr.f32.mxu0 %v526
        %1441 = vmatmul.mubr.f32.gmra.mrb[0].mxu0 %v494
        %v1442 = vpop.f32.mrb[0].mxu0
        %v1443 = vadd.f32 %v1218, %v1442
        %v1444 = vpop.f32.mrb[0].mxu0
        %1445 = vmatprep.mubr.f32.mxu0 %v527
        %1446 = vmatmul.mubr.f32.gmra.mrb[0].mxu0 %v495
        %v1447 = vpop.f32.mrb[0].mxu0
        %v1448 = vadd.f32 %v1223, %v1447
        %v1449 = vpop.f32.mrb[0].mxu0
        %1450 = vdwg.mxu0
        %1451 = vmatprep.subr.mxu0 0.0
        %1452 = vmatpush1.msra.mxu0 %v721
        %1453 = vmatprep.subr.mxu0 0.0
        %1454 = vmatpush1.msra.mxu0 %v722
        %1455 = vmatprep.subr.mxu0 0.0
        %1456 = vmatpush1.msra.mxu0 %v723
        %1457 = vmatprep.subr.mxu0 0.0
        %1458 = vmatpush1.msra.mxu0 %v724
        %1459 = vmatprep.subr.mxu0 0.0
        %1460 = vmatpush1.msra.mxu0 %v725
        %1461 = vmatprep.subr.mxu0 0.0
        %1462 = vmatpush1.msra.mxu0 %v726
        %1463 = vmatprep.subr.mxu0 0.0
        %1464 = vmatpush1.msra.mxu0 %v727
        %1465 = vmatprep.subr.mxu0 0.0
        %1466 = vmatpush1.msra.mxu0 %v728
        %1467 = vmatprep.subr.mxu0 0.0
        %1468 = vmatpush1.msra.mxu0 %v729
        %1469 = vmatprep.subr.mxu0 0.0
        %1470 = vmatpush1.msra.mxu0 %v730
        %1471 = vmatprep.subr.mxu0 0.0
        %1472 = vmatpush1.msra.mxu0 %v731
        %1473 = vmatprep.subr.mxu0 0.0
        %1474 = vmatpush1.msra.mxu0 %v732
        %1475 = vmatprep.subr.mxu0 0.0
        %1476 = vmatpush1.msra.mxu0 %v733
        %1477 = vmatprep.subr.mxu0 0.0
        %1478 = vmatpush1.msra.mxu0 %v734
        %1479 = vmatprep.subr.mxu0 0.0
        %1480 = vmatpush1.msra.mxu0 %v735
        %1481 = vmatprep.subr.mxu0 0.0
        %1482 = vmatpush1.msra.mxu0 %v736
        %1483 = vmatprep.subr.mxu0 0.0
        %1484 = vmatpush1.msra.mxu0 %v737
        %1485 = vmatprep.subr.mxu0 0.0
        %1486 = vmatpush1.msra.mxu0 %v738
        %1487 = vmatprep.subr.mxu0 0.0
        %1488 = vmatpush1.msra.mxu0 %v739
        %1489 = vmatprep.subr.mxu0 0.0
        %1490 = vmatpush1.msra.mxu0 %v740
        %1491 = vmatprep.subr.mxu0 0.0
        %1492 = vmatpush1.msra.mxu0 %v741
        %1493 = vmatprep.subr.mxu0 0.0
        %1494 = vmatpush1.msra.mxu0 %v742
        %1495 = vmatprep.subr.mxu0 0.0
        %1496 = vmatpush1.msra.mxu0 %v743
        %1497 = vmatprep.subr.mxu0 0.0
        %1498 = vmatpush1.msra.mxu0 %v744
        %1499 = vmatprep.subr.mxu0 0.0
        %1500 = vmatpush1.msra.mxu0 %v745
        %1501 = vmatprep.subr.mxu0 0.0
        %1502 = vmatpush1.msra.mxu0 %v746
        %1503 = vmatprep.subr.mxu0 0.0
        %1504 = vmatpush1.msra.mxu0 %v747
        %1505 = vmatprep.subr.mxu0 0.0
        %1506 = vmatpush1.msra.mxu0 %v748
        %1507 = vmatprep.subr.mxu0 0.0
        %1508 = vmatpush1.msra.mxu0 %v749
        %1509 = vmatprep.subr.mxu0 0.0
        %1510 = vmatpush1.msra.mxu0 %v750
        %1511 = vmatprep.subr.mxu0 0.0
        %1512 = vmatpush1.msra.mxu0 %v751
        %1513 = vmatprep.subr.mxu0 0.0
        %1514 = vmatpush1.msra.mxu0 %v752
        %1515 = vmatprep.mubr.f32.mxu0 %v561
        %1516 = vmatmul.mubr.f32.gmra.mrb[0].mxu0 %v529
        %v1517 = vpop.f32.mrb[0].mxu0
        %v1518 = vadd.f32 %v1293, %v1517
        %v1519 = vpop.f32.mrb[0].mxu0
        %1520 = vmatprep.mubr.f32.mxu0 %v562
        %1521 = vmatmul.mubr.f32.gmra.mrb[0].mxu0 %v530
        %v1522 = vpop.f32.mrb[0].mxu0
        %v1523 = vadd.f32 %v1298, %v1522
        %v1524 = vpop.f32.mrb[0].mxu0
        %1525 = vmatprep.mubr.f32.mxu0 %v563
        %1526 = vmatmul.mubr.f32.gmra.mrb[0].mxu0 %v531
        %v1527 = vpop.f32.mrb[0].mxu0
        %v1528 = vadd.f32 %v1303, %v1527
        %v1529 = vpop.f32.mrb[0].mxu0
        %1530 = vmatprep.mubr.f32.mxu0 %v564
        %1531 = vmatmul.mubr.f32.gmra.mrb[0].mxu0 %v532
        %v1532 = vpop.f32.mrb[0].mxu0
        %v1533 = vadd.f32 %v1308, %v1532
        %v1534 = vpop.f32.mrb[0].mxu0
        %1535 = vmatprep.mubr.f32.mxu0 %v565
        %1536 = vmatmul.mubr.f32.gmra.mrb[0].mxu0 %v533
        %v1537 = vpop.f32.mrb[0].mxu0
        %v1538 = vadd.f32 %v1313, %v1537
        %v1539 = vpop.f32.mrb[0].mxu0
        %1540 = vmatprep.mubr.f32.mxu0 %v566
        %1541 = vmatmul.mubr.f32.gmra.mrb[0].mxu0 %v534
        %v1542 = vpop.f32.mrb[0].mxu0
        %v1543 = vadd.f32 %v1318, %v1542
        %v1544 = vpop.f32.mrb[0].mxu0
        %1545 = vmatprep.mubr.f32.mxu0 %v567
        %1546 = vmatmul.mubr.f32.gmra.mrb[0].mxu0 %v535
        %v1547 = vpop.f32.mrb[0].mxu0
        %v1548 = vadd.f32 %v1323, %v1547
        %v1549 = vpop.f32.mrb[0].mxu0
        %1550 = vmatprep.mubr.f32.mxu0 %v568
        %1551 = vmatmul.mubr.f32.gmra.mrb[0].mxu0 %v536
        %v1552 = vpop.f32.mrb[0].mxu0
        %v1553 = vadd.f32 %v1328, %v1552
        %v1554 = vpop.f32.mrb[0].mxu0
        %1555 = vmatprep.mubr.f32.mxu0 %v569
        %1556 = vmatmul.mubr.f32.gmra.mrb[0].mxu0 %v537
        %v1557 = vpop.f32.mrb[0].mxu0
        %v1558 = vadd.f32 %v1333, %v1557
        %v1559 = vpop.f32.mrb[0].mxu0
        %1560 = vmatprep.mubr.f32.mxu0 %v570
        %1561 = vmatmul.mubr.f32.gmra.mrb[0].mxu0 %v538
        %v1562 = vpop.f32.mrb[0].mxu0
        %v1563 = vadd.f32 %v1338, %v1562
        %v1564 = vpop.f32.mrb[0].mxu0
        %1565 = vmatprep.mubr.f32.mxu0 %v571
        %1566 = vmatmul.mubr.f32.gmra.mrb[0].mxu0 %v539
        %v1567 = vpop.f32.mrb[0].mxu0
        %v1568 = vadd.f32 %v1343, %v1567
        %v1569 = vpop.f32.mrb[0].mxu0
        %1570 = vmatprep.mubr.f32.mxu0 %v572
        %1571 = vmatmul.mubr.f32.gmra.mrb[0].mxu0 %v540
        %v1572 = vpop.f32.mrb[0].mxu0
        %v1573 = vadd.f32 %v1348, %v1572
        %v1574 = vpop.f32.mrb[0].mxu0
        %1575 = vmatprep.mubr.f32.mxu0 %v573
        %1576 = vmatmul.mubr.f32.gmra.mrb[0].mxu0 %v541
        %v1577 = vpop.f32.mrb[0].mxu0
        %v1578 = vadd.f32 %v1353, %v1577
        %v1579 = vpop.f32.mrb[0].mxu0
        %1580 = vmatprep.mubr.f32.mxu0 %v574
        %1581 = vmatmul.mubr.f32.gmra.mrb[0].mxu0 %v542
        %v1582 = vpop.f32.mrb[0].mxu0
        %v1583 = vadd.f32 %v1358, %v1582
        %v1584 = vpop.f32.mrb[0].mxu0
        %1585 = vmatprep.mubr.f32.mxu0 %v575
        %1586 = vmatmul.mubr.f32.gmra.mrb[0].mxu0 %v543
        %v1587 = vpop.f32.mrb[0].mxu0
        %v1588 = vadd.f32 %v1363, %v1587
        %v1589 = vpop.f32.mrb[0].mxu0
        %1590 = vmatprep.mubr.f32.mxu0 %v576
        %1591 = vmatmul.mubr.f32.gmra.mrb[0].mxu0 %v544
        %v1592 = vpop.f32.mrb[0].mxu0
        %v1593 = vadd.f32 %v1368, %v1592
        %v1594 = vpop.f32.mrb[0].mxu0
        %1595 = vmatprep.mubr.f32.mxu0 %v577
        %1596 = vmatmul.mubr.f32.gmra.mrb[0].mxu0 %v545
        %v1597 = vpop.f32.mrb[0].mxu0
        %v1598 = vadd.f32 %v1373, %v1597
        %v1599 = vpop.f32.mrb[0].mxu0
        %1600 = vmatprep.mubr.f32.mxu0 %v578
        %1601 = vmatmul.mubr.f32.gmra.mrb[0].mxu0 %v546
        %v1602 = vpop.f32.mrb[0].mxu0
        %v1603 = vadd.f32 %v1378, %v1602
        %v1604 = vpop.f32.mrb[0].mxu0
        %1605 = vmatprep.mubr.f32.mxu0 %v579
        %1606 = vmatmul.mubr.f32.gmra.mrb[0].mxu0 %v547
        %v1607 = vpop.f32.mrb[0].mxu0
        %v1608 = vadd.f32 %v1383, %v1607
        %v1609 = vpop.f32.mrb[0].mxu0
        %1610 = vmatprep.mubr.f32.mxu0 %v580
        %1611 = vmatmul.mubr.f32.gmra.mrb[0].mxu0 %v548
        %v1612 = vpop.f32.mrb[0].mxu0
        %v1613 = vadd.f32 %v1388, %v1612
        %v1614 = vpop.f32.mrb[0].mxu0
        %1615 = vmatprep.mubr.f32.mxu0 %v581
        %1616 = vmatmul.mubr.f32.gmra.mrb[0].mxu0 %v549
        %v1617 = vpop.f32.mrb[0].mxu0
        %v1618 = vadd.f32 %v1393, %v1617
        %v1619 = vpop.f32.mrb[0].mxu0
        %1620 = vmatprep.mubr.f32.mxu0 %v582
        %1621 = vmatmul.mubr.f32.gmra.mrb[0].mxu0 %v550
        %v1622 = vpop.f32.mrb[0].mxu0
        %v1623 = vadd.f32 %v1398, %v1622
        %v1624 = vpop.f32.mrb[0].mxu0
        %1625 = vmatprep.mubr.f32.mxu0 %v583
        %1626 = vmatmul.mubr.f32.gmra.mrb[0].mxu0 %v551
        %v1627 = vpop.f32.mrb[0].mxu0
        %v1628 = vadd.f32 %v1403, %v1627
        %v1629 = vpop.f32.mrb[0].mxu0
        %1630 = vmatprep.mubr.f32.mxu0 %v584
        %1631 = vmatmul.mubr.f32.gmra.mrb[0].mxu0 %v552
        %v1632 = vpop.f32.mrb[0].mxu0
        %v1633 = vadd.f32 %v1408, %v1632
        %v1634 = vpop.f32.mrb[0].mxu0
        %1635 = vmatprep.mubr.f32.mxu0 %v585
        %1636 = vmatmul.mubr.f32.gmra.mrb[0].mxu0 %v553
        %v1637 = vpop.f32.mrb[0].mxu0
        %v1638 = vadd.f32 %v1413, %v1637
        %v1639 = vpop.f32.mrb[0].mxu0
        %1640 = vmatprep.mubr.f32.mxu0 %v586
        %1641 = vmatmul.mubr.f32.gmra.mrb[0].mxu0 %v554
        %v1642 = vpop.f32.mrb[0].mxu0
        %v1643 = vadd.f32 %v1418, %v1642
        %v1644 = vpop.f32.mrb[0].mxu0
        %1645 = vmatprep.mubr.f32.mxu0 %v587
        %1646 = vmatmul.mubr.f32.gmra.mrb[0].mxu0 %v555
        %v1647 = vpop.f32.mrb[0].mxu0
        %v1648 = vadd.f32 %v1423, %v1647
        %v1649 = vpop.f32.mrb[0].mxu0
        %1650 = vmatprep.mubr.f32.mxu0 %v588
        %1651 = vmatmul.mubr.f32.gmra.mrb[0].mxu0 %v556
        %v1652 = vpop.f32.mrb[0].mxu0
        %v1653 = vadd.f32 %v1428, %v1652
        %v1654 = vpop.f32.mrb[0].mxu0
        %1655 = vmatprep.mubr.f32.mxu0 %v589
        %1656 = vmatmul.mubr.f32.gmra.mrb[0].mxu0 %v557
        %v1657 = vpop.f32.mrb[0].mxu0
        %v1658 = vadd.f32 %v1433, %v1657
        %v1659 = vpop.f32.mrb[0].mxu0
        %1660 = vmatprep.mubr.f32.mxu0 %v590
        %1661 = vmatmul.mubr.f32.gmra.mrb[0].mxu0 %v558
        %v1662 = vpop.f32.mrb[0].mxu0
        %v1663 = vadd.f32 %v1438, %v1662
        %v1664 = vpop.f32.mrb[0].mxu0
        %1665 = vmatprep.mubr.f32.mxu0 %v591
        %1666 = vmatmul.mubr.f32.gmra.mrb[0].mxu0 %v559
        %v1667 = vpop.f32.mrb[0].mxu0
        %v1668 = vadd.f32 %v1443, %v1667
        %v1669 = vpop.f32.mrb[0].mxu0
        %1670 = vmatprep.mubr.f32.mxu0 %v592
        %1671 = vmatmul.mubr.f32.gmra.mrb[0].mxu0 %v560
        %v1672 = vpop.f32.mrb[0].mxu0
        %v1673 = vadd.f32 %v1448, %v1672
        %v1674 = vpop.f32.mrb[0].mxu0
        %1675 = vdwg.mxu0
        %1676 = vmatprep.subr.mxu0 0.0
        %1677 = vmatpush1.msra.mxu0 %v753
        %1678 = vmatprep.subr.mxu0 0.0
        %1679 = vmatpush1.msra.mxu0 %v754
        %1680 = vmatprep.subr.mxu0 0.0
        %1681 = vmatpush1.msra.mxu0 %v755
        %1682 = vmatprep.subr.mxu0 0.0
        %1683 = vmatpush1.msra.mxu0 %v756
        %1684 = vmatprep.subr.mxu0 0.0
        %1685 = vmatpush1.msra.mxu0 %v757
        %1686 = vmatprep.subr.mxu0 0.0
        %1687 = vmatpush1.msra.mxu0 %v758
        %1688 = vmatprep.subr.mxu0 0.0
        %1689 = vmatpush1.msra.mxu0 %v759
        %1690 = vmatprep.subr.mxu0 0.0
        %1691 = vmatpush1.msra.mxu0 %v760
        %1692 = vmatprep.subr.mxu0 0.0
        %1693 = vmatpush1.msra.mxu0 %v761
        %1694 = vmatprep.subr.mxu0 0.0
        %1695 = vmatpush1.msra.mxu0 %v762
        %1696 = vmatprep.subr.mxu0 0.0
        %1697 = vmatpush1.msra.mxu0 %v763
        %1698 = vmatprep.subr.mxu0 0.0
        %1699 = vmatpush1.msra.mxu0 %v764
        %1700 = vmatprep.subr.mxu0 0.0
        %1701 = vmatpush1.msra.mxu0 %v765
        %1702 = vmatprep.subr.mxu0 0.0
        %1703 = vmatpush1.msra.mxu0 %v766
        %1704 = vmatprep.subr.mxu0 0.0
        %1705 = vmatpush1.msra.mxu0 %v767
        %1706 = vmatprep.subr.mxu0 0.0
        %1707 = vmatpush1.msra.mxu0 %v768
        %1708 = vmatprep.subr.mxu0 0.0
        %1709 = vmatpush1.msra.mxu0 0.0
        %1710 = vmatprep.subr.mxu0 0.0
        %1711 = vmatpush1.msra.mxu0 0.0
        %1712 = vmatprep.subr.mxu0 0.0
        %1713 = vmatpush1.msra.mxu0 0.0
        %1714 = vmatprep.subr.mxu0 0.0
        %1715 = vmatpush1.msra.mxu0 0.0
        %1716 = vmatprep.subr.mxu0 0.0
        %1717 = vmatpush1.msra.mxu0 0.0
        %1718 = vmatprep.subr.mxu0 0.0
        %1719 = vmatpush1.msra.mxu0 0.0
        %1720 = vmatprep.subr.mxu0 0.0
        %1721 = vmatpush1.msra.mxu0 0.0
        %1722 = vmatprep.subr.mxu0 0.0
        %1723 = vmatpush1.msra.mxu0 0.0
        %1724 = vmatprep.subr.mxu0 0.0
        %1725 = vmatpush1.msra.mxu0 0.0
        %1726 = vmatprep.subr.mxu0 0.0
        %1727 = vmatpush1.msra.mxu0 0.0
        %1728 = vmatprep.subr.mxu0 0.0
        %1729 = vmatpush1.msra.mxu0 0.0
        %1730 = vmatprep.subr.mxu0 0.0
        %1731 = vmatpush1.msra.mxu0 0.0
        %1732 = vmatprep.subr.mxu0 0.0
        %1733 = vmatpush1.msra.mxu0 0.0
        %1734 = vmatprep.subr.mxu0 0.0
        %1735 = vmatpush1.msra.mxu0 0.0
        %1736 = vmatprep.subr.mxu0 0.0
        %1737 = vmatpush1.msra.mxu0 0.0
        %1738 = vmatprep.subr.mxu0 0.0
        %1739 = vmatpush1.msra.mxu0 0.0
        %1740 = vmatprep.mubr.f32.mxu0 0.0
        %1741 = vmatmul.mubr.f32.gmra.mrb[0].mxu0 %v593
        %v1742 = vpop.f32.mrb[0].mxu0
        %v1743 = vadd.f32 %v1518, %v1742
        %v1744 = vpop.f32.mrb[0].mxu0
        %1745 = vmatprep.mubr.f32.mxu0 0.0
        %1746 = vmatmul.mubr.f32.gmra.mrb[0].mxu0 %v594
        %v1747 = vpop.f32.mrb[0].mxu0
        %v1748 = vadd.f32 %v1523, %v1747
        %v1749 = vpop.f32.mrb[0].mxu0
        %1750 = vmatprep.mubr.f32.mxu0 0.0
        %1751 = vmatmul.mubr.f32.gmra.mrb[0].mxu0 %v595
        %v1752 = vpop.f32.mrb[0].mxu0
        %v1753 = vadd.f32 %v1528, %v1752
        %v1754 = vpop.f32.mrb[0].mxu0
        %1755 = vmatprep.mubr.f32.mxu0 0.0
        %1756 = vmatmul.mubr.f32.gmra.mrb[0].mxu0 %v596
        %v1757 = vpop.f32.mrb[0].mxu0
        %v1758 = vadd.f32 %v1533, %v1757
        %v1759 = vpop.f32.mrb[0].mxu0
        %1760 = vmatprep.mubr.f32.mxu0 0.0
        %1761 = vmatmul.mubr.f32.gmra.mrb[0].mxu0 %v597
        %v1762 = vpop.f32.mrb[0].mxu0
        %v1763 = vadd.f32 %v1538, %v1762
        %v1764 = vpop.f32.mrb[0].mxu0
        %1765 = vmatprep.mubr.f32.mxu0 0.0
        %1766 = vmatmul.mubr.f32.gmra.mrb[0].mxu0 %v598
        %v1767 = vpop.f32.mrb[0].mxu0
        %v1768 = vadd.f32 %v1543, %v1767
        %v1769 = vpop.f32.mrb[0].mxu0
        %1770 = vmatprep.mubr.f32.mxu0 0.0
        %1771 = vmatmul.mubr.f32.gmra.mrb[0].mxu0 %v599
        %v1772 = vpop.f32.mrb[0].mxu0
        %v1773 = vadd.f32 %v1548, %v1772
        %v1774 = vpop.f32.mrb[0].mxu0
        %1775 = vmatprep.mubr.f32.mxu0 0.0
        %1776 = vmatmul.mubr.f32.gmra.mrb[0].mxu0 %v600
        %v1777 = vpop.f32.mrb[0].mxu0
        %v1778 = vadd.f32 %v1553, %v1777
        %v1779 = vpop.f32.mrb[0].mxu0
        %1780 = vmatprep.mubr.f32.mxu0 0.0
        %1781 = vmatmul.mubr.f32.gmra.mrb[0].mxu0 %v601
        %v1782 = vpop.f32.mrb[0].mxu0
        %v1783 = vadd.f32 %v1558, %v1782
        %v1784 = vpop.f32.mrb[0].mxu0
        %1785 = vmatprep.mubr.f32.mxu0 0.0
        %1786 = vmatmul.mubr.f32.gmra.mrb[0].mxu0 %v602
        %v1787 = vpop.f32.mrb[0].mxu0
        %v1788 = vadd.f32 %v1563, %v1787
        %v1789 = vpop.f32.mrb[0].mxu0
        %1790 = vmatprep.mubr.f32.mxu0 0.0
        %1791 = vmatmul.mubr.f32.gmra.mrb[0].mxu0 %v603
        %v1792 = vpop.f32.mrb[0].mxu0
        %v1793 = vadd.f32 %v1568, %v1792
        %v1794 = vpop.f32.mrb[0].mxu0
        %1795 = vmatprep.mubr.f32.mxu0 0.0
        %1796 = vmatmul.mubr.f32.gmra.mrb[0].mxu0 %v604
        %v1797 = vpop.f32.mrb[0].mxu0
        %v1798 = vadd.f32 %v1573, %v1797
        %v1799 = vpop.f32.mrb[0].mxu0
        %1800 = vmatprep.mubr.f32.mxu0 0.0
        %1801 = vmatmul.mubr.f32.gmra.mrb[0].mxu0 %v605
        %v1802 = vpop.f32.mrb[0].mxu0
        %v1803 = vadd.f32 %v1578, %v1802
        %v1804 = vpop.f32.mrb[0].mxu0
        %1805 = vmatprep.mubr.f32.mxu0 0.0
        %1806 = vmatmul.mubr.f32.gmra.mrb[0].mxu0 %v606
        %v1807 = vpop.f32.mrb[0].mxu0
        %v1808 = vadd.f32 %v1583, %v1807
        %v1809 = vpop.f32.mrb[0].mxu0
        %1810 = vmatprep.mubr.f32.mxu0 0.0
        %1811 = vmatmul.mubr.f32.gmra.mrb[0].mxu0 %v607
        %v1812 = vpop.f32.mrb[0].mxu0
        %v1813 = vadd.f32 %v1588, %v1812
        %v1814 = vpop.f32.mrb[0].mxu0
        %1815 = vmatprep.mubr.f32.mxu0 0.0
        %1816 = vmatmul.mubr.f32.gmra.mrb[0].mxu0 %v608
        %v1817 = vpop.f32.mrb[0].mxu0
        %v1818 = vadd.f32 %v1593, %v1817
        %v1819 = vpop.f32.mrb[0].mxu0
        %1820 = vmatprep.mubr.f32.mxu0 0.0
        %1821 = vmatmul.mubr.f32.gmra.mrb[0].mxu0 %v609
        %v1822 = vpop.f32.mrb[0].mxu0
        %v1823 = vadd.f32 %v1598, %v1822
        %v1824 = vpop.f32.mrb[0].mxu0
        %1825 = vmatprep.mubr.f32.mxu0 0.0
        %1826 = vmatmul.mubr.f32.gmra.mrb[0].mxu0 %v610
        %v1827 = vpop.f32.mrb[0].mxu0
        %v1828 = vadd.f32 %v1603, %v1827
        %v1829 = vpop.f32.mrb[0].mxu0
        %1830 = vmatprep.mubr.f32.mxu0 0.0
        %1831 = vmatmul.mubr.f32.gmra.mrb[0].mxu0 %v611
        %v1832 = vpop.f32.mrb[0].mxu0
        %v1833 = vadd.f32 %v1608, %v1832
        %v1834 = vpop.f32.mrb[0].mxu0
        %1835 = vmatprep.mubr.f32.mxu0 0.0
        %1836 = vmatmul.mubr.f32.gmra.mrb[0].mxu0 %v612
        %v1837 = vpop.f32.mrb[0].mxu0
        %v1838 = vadd.f32 %v1613, %v1837
        %v1839 = vpop.f32.mrb[0].mxu0
        %1840 = vmatprep.mubr.f32.mxu0 0.0
        %1841 = vmatmul.mubr.f32.gmra.mrb[0].mxu0 %v613
        %v1842 = vpop.f32.mrb[0].mxu0
        %v1843 = vadd.f32 %v1618, %v1842
        %v1844 = vpop.f32.mrb[0].mxu0
        %1845 = vmatprep.mubr.f32.mxu0 0.0
        %1846 = vmatmul.mubr.f32.gmra.mrb[0].mxu0 %v614
        %v1847 = vpop.f32.mrb[0].mxu0
        %v1848 = vadd.f32 %v1623, %v1847
        %v1849 = vpop.f32.mrb[0].mxu0
        %1850 = vmatprep.mubr.f32.mxu0 0.0
        %1851 = vmatmul.mubr.f32.gmra.mrb[0].mxu0 %v615
        %v1852 = vpop.f32.mrb[0].mxu0
        %v1853 = vadd.f32 %v1628, %v1852
        %v1854 = vpop.f32.mrb[0].mxu0
        %1855 = vmatprep.mubr.f32.mxu0 0.0
        %1856 = vmatmul.mubr.f32.gmra.mrb[0].mxu0 %v616
        %v1857 = vpop.f32.mrb[0].mxu0
        %v1858 = vadd.f32 %v1633, %v1857
        %v1859 = vpop.f32.mrb[0].mxu0
        %1860 = vmatprep.mubr.f32.mxu0 0.0
        %1861 = vmatmul.mubr.f32.gmra.mrb[0].mxu0 %v617
        %v1862 = vpop.f32.mrb[0].mxu0
        %v1863 = vadd.f32 %v1638, %v1862
        %v1864 = vpop.f32.mrb[0].mxu0
        %1865 = vmatprep.mubr.f32.mxu0 0.0
        %1866 = vmatmul.mubr.f32.gmra.mrb[0].mxu0 %v618
        %v1867 = vpop.f32.mrb[0].mxu0
        %v1868 = vadd.f32 %v1643, %v1867
        %v1869 = vpop.f32.mrb[0].mxu0
        %1870 = vmatprep.mubr.f32.mxu0 0.0
        %1871 = vmatmul.mubr.f32.gmra.mrb[0].mxu0 %v619
        %v1872 = vpop.f32.mrb[0].mxu0
        %v1873 = vadd.f32 %v1648, %v1872
        %v1874 = vpop.f32.mrb[0].mxu0
        %1875 = vmatprep.mubr.f32.mxu0 0.0
        %1876 = vmatmul.mubr.f32.gmra.mrb[0].mxu0 %v620
        %v1877 = vpop.f32.mrb[0].mxu0
        %v1878 = vadd.f32 %v1653, %v1877
        %v1879 = vpop.f32.mrb[0].mxu0
        %1880 = vmatprep.mubr.f32.mxu0 0.0
        %1881 = vmatmul.mubr.f32.gmra.mrb[0].mxu0 %v621
        %v1882 = vpop.f32.mrb[0].mxu0
        %v1883 = vadd.f32 %v1658, %v1882
        %v1884 = vpop.f32.mrb[0].mxu0
        %1885 = vmatprep.mubr.f32.mxu0 0.0
        %1886 = vmatmul.mubr.f32.gmra.mrb[0].mxu0 %v622
        %v1887 = vpop.f32.mrb[0].mxu0
        %v1888 = vadd.f32 %v1663, %v1887
        %v1889 = vpop.f32.mrb[0].mxu0
        %1890 = vmatprep.mubr.f32.mxu0 0.0
        %1891 = vmatmul.mubr.f32.gmra.mrb[0].mxu0 %v623
        %v1892 = vpop.f32.mrb[0].mxu0
        %v1893 = vadd.f32 %v1668, %v1892
        %v1894 = vpop.f32.mrb[0].mxu0
        %1895 = vmatprep.mubr.f32.mxu0 0.0
        %1896 = vmatmul.mubr.f32.gmra.mrb[0].mxu0 %v624
        %v1897 = vpop.f32.mrb[0].mxu0
        %v1898 = vadd.f32 %v1673, %v1897
        %v1899 = vpop.f32.mrb[0].mxu0
        %1900 = vdwg.mxu0
        %1901 = vst [vmem:[%s215] sm:$0xff] %v1743
        %1902 = vst [vmem:[%s215 + $0x8] sm:$0xff] %v1748
        %1903 = vst [vmem:[%s215 + $0x10] sm:$0xff] %v1753
        %1904 = vst [vmem:[%s215 + $0x18] sm:$0xff] %v1758
        %1905 = vst [vmem:[%s215 + $0x20] sm:$0xff] %v1763
        %1906 = vst [vmem:[%s215 + $0x28] sm:$0xff] %v1768
        %1907 = vst [vmem:[%s215 + $0x30] sm:$0xff] %v1773
        %1908 = vst [vmem:[%s215 + $0x38] sm:$0xff] %v1778
        %1909 = vst [vmem:[%s215 + $0x40] sm:$0xff] %v1783
        %1910 = vst [vmem:[%s215 + $0x48] sm:$0xff] %v1788
        %1911 = vst [vmem:[%s215 + $0x50] sm:$0xff] %v1793
        %1912 = vst [vmem:[%s215 + $0x58] sm:$0xff] %v1798
        %1913 = vst [vmem:[%s215 + $0x60] sm:$0xff] %v1803
        %1914 = vst [vmem:[%s215 + $0x68] sm:$0xff] %v1808
        %1915 = vst [vmem:[%s215 + $0x70] sm:$0xff] %v1813
        %1916 = vst [vmem:[%s215 + $0x78] sm:$0xff] %v1818
        %1917 = vst [vmem:[%s215 + $0x80] sm:$0xff] %v1823
        %1918 = vst [vmem:[%s215 + $0x88] sm:$0xff] %v1828
        %1919 = vst [vmem:[%s215 + $0x90] sm:$0xff] %v1833
        %1920 = vst [vmem:[%s215 + $0x98] sm:$0xff] %v1838
        %1921 = vst [vmem:[%s215 + $0xa0] sm:$0xff] %v1843
        %1922 = vst [vmem:[%s215 + $0xa8] sm:$0xff] %v1848
        %1923 = vst [vmem:[%s215 + $0xb0] sm:$0xff] %v1853
        %1924 = vst [vmem:[%s215 + $0xb8] sm:$0xff] %v1858
        %1925 = vst [vmem:[%s215 + $0xc0] sm:$0xff] %v1863
        %1926 = vst [vmem:[%s215 + $0xc8] sm:$0xff] %v1868
        %1927 = vst [vmem:[%s215 + $0xd0] sm:$0xff] %v1873
        %1928 = vst [vmem:[%s215 + $0xd8] sm:$0xff] %v1878
        %1929 = vst [vmem:[%s215 + $0xe0] sm:$0xff] %v1883
        %1930 = vst [vmem:[%s215 + $0xe8] sm:$0xff] %v1888
        %1931 = vst [vmem:[%s215 + $0xf0] sm:$0xff] %v1893
        %1932 = vst [vmem:[%s215 + $0xf8] sm:$0xff] %v1898
        %s1933 = sand.u32 %s97, 1
        %s1934 = scalar_lea.sflag [#allocation5], %s1933
        %s1935 = sand.u32 %s97, 1
        %s1936 = smul.addr %s1935, 256
        %s1937 = scalar_lea.vmem [#allocation9], %s1936
        // Predicated region
        $region45: #{tpu_custom_call.1} parent=31 // pred_check
          %p1938 = pneg %p107
        $region46: #{tpu_custom_call.1} parent=31 // pred_check_branch
          %1940 = sbr.rel (%p1938) target = $region48
        $region47: #{tpu_custom_call.1} parent=31 // pred_region
          %s1942 = ssub.s32 4096, 4096
          %1943 = vsyncadd %s1934, %s1942
          %s1944 = smul.addr %s21, 32
          %s1945 = smul.addr %s1944, 128
          %s1946 = scalar_lea.hbm %s3, %s1945
          %s1947 = sshll.u32 %s1937, 4
          %s1948 = int_to_ptr.vmem [resolvable:$true] %s1947
          %1953 = dma.vmem_to_hbm [thread:$0]  %s1948, 4096, %s1946, %s1934, 128, 128, 8
        $region48: #{tpu_custom_call.1} parent=31 // pred_fallthru
          _
      $region32: #{tpu_custom_call.1} parent=5 // pred_fallthru
        _
      %p1954 = scmp.le.s32.totalorder 2, %s16
      // Predicated region
      $region49: #{tpu_custom_call.1} parent=5 // pred_check
        %p1955 = pneg %p1954
      $region50: #{tpu_custom_call.1} parent=5 // pred_check_branch
        %1957 = sbr.rel (%p1955) target = $region52
      $region51: #{tpu_custom_call.1} parent=5 // pred_region
        %s1958 = ssub.s32 %s16, 2
        // Predicated region
        $region53: #{tpu_custom_call.1} parent=51 // pred_check
          %p1959 = pneg %p113
        $region54: #{tpu_custom_call.1} parent=51 // pred_check_branch
          %1961 = sbr.rel (%p1959) target = $region56
        $region55: #{tpu_custom_call.1} parent=51 // pred_region
          %s1962 = sand.u32 %s98, 1
          %s1963 = scalar_lea.sflag [#allocation5], %s1962
          %s1964 = sand.u32 %s98, 1
          %s1965 = smul.addr %s1964, 256
          %s1966 = scalar_lea.vmem [#allocation9], %s1965
          %1967 = dma.done %s1963, 4096
        $region56: #{tpu_custom_call.1} parent=51 // pred_fallthru
          _
      $region52: #{tpu_custom_call.1} parent=5 // pred_fallthru
        _
    $region6: #{tpu_custom_call.1} parent=1 // loop_footer
      %s20 = sadd.s32 1, %s16
    $region7: #{tpu_custom_call.1} parent=1 // loop_footer_branch
      %15 = sbr.rel target = $region3
    $region8: #{tpu_custom_call.1} parent=1 // loop_exit
      _
    %1968 = vsyncpa [#allocation4], 1
    %s1969 = scalar_lea.sflag [#allocation4], 1
    %1970 = vsyncpa %s1969, 1
    %1971 = vsyncpa [#allocation7], 1
    %1972 = vsyncpa [#allocation5], 1
    %s1973 = scalar_lea.sflag [#allocation5], 1
    %1974 = vsyncpa %s1973, 1

</llo_original>
